<compile_context>
chip_gen: v7x
topology: tpu7x:2x2x1
jax: 0.10.0
libtpu: 0.0.40
codegen_flags: <defaults>
</compile_context>

<pallas_src>
import jax
import jax.numpy as jnp
from jax import lax
from jax.experimental import pallas as pl
from jax.experimental.pallas import tpu as pltpu

D_IN = 768          # embedder hidden size (LSTM input size)
H = 64              # LSTM hidden size
N_OUT = 2           # classifier outputs
HP = 128            # per-gate lane-padded hidden width (lane-aligned slices)
G4 = 4 * HP         # packed gate width: i|f|o|g, 128 lanes each
NP = 128            # lane-padded classifier output width

# dst gate slots i|f|o|g  <-  PyTorch source gate order i,f,g,o
_GATE_SRC_FOR_DST = (0, 1, 3, 2)


def _round_up(x, m):
    return (x + m - 1) // m * m


# --------------------------------------------------------------------------
# Kernel 1: hoisted input projection  gates_x = bf16(x) @ W_ih_pad + b_pad
# (one big MXU matmul over M = B*T rows; bf16 operands, f32 accumulation,
#  bf16 intermediate store)
# --------------------------------------------------------------------------
def _proj_kernel(x_ref, w_ref, b_ref, out_ref):
    acc = jnp.dot(x_ref[...].astype(jnp.bfloat16), w_ref[...],
                  preferred_element_type=jnp.float32) + b_ref[...]
    out_ref[...] = acc.astype(out_ref.dtype)


def _input_projection(x2d, wih_bf16, b_pad):
    """x2d: (M, 768) f32  ->  (M, G4) bf16 gate pre-activations."""
    m0 = x2d.shape[0]
    m8 = _round_up(m0, 8)
    if m8 != m0:                      # tiny (<8 row) pad only, never a full tile
        x2d = jnp.pad(x2d, ((0, m8 - m0), (0, 0)))
    tm = min(512, m8)                 # 512 rows ~ 85% of HBM roofline, fits VMEM

    out = pl.pallas_call(
        _proj_kernel,
        out_shape=jax.ShapeDtypeStruct((m8, G4), jnp.bfloat16),
        grid_spec=pltpu.PrefetchScalarGridSpec(
            num_scalar_prefetch=0,
            grid=(pl.cdiv(m8, tm),),            # ragged last tile is masked
            in_specs=[
                pl.BlockSpec((tm, D_IN), lambda i: (i, 0)),
                pl.BlockSpec((D_IN, G4), lambda i: (0, 0)),
                pl.BlockSpec((1, G4), lambda i: (0, 0)),
            ],
            out_specs=pl.BlockSpec((tm, G4), lambda i: (i, 0)),
        ),
        compiler_params=pltpu.CompilerParams(
            dimension_semantics=("parallel",)),
    )(x2d, wih_bf16, b_pad)
    return out[:m0]


# --------------------------------------------------------------------------
# Kernel 2: LSTM recurrence chunked over time  +  Linear + sigmoid head
# --------------------------------------------------------------------------
def _lstm_head(gx_tbg, whh_bf16, wlin_pad, blin_pad):
    """gx_tbg: (T, B, G4) bf16 time-major gate pre-activations from x."""
    T, B, _ = gx_tbg.shape
    Tc = min(T, 32)                    # time chunk; DMA pipelines across chunks
    grid_t = pl.cdiv(T, Tc)
    tail_mask = (T % Tc) != 0          # static: ragged last chunk needs masking
    unroll = Tc if Tc <= 8 else 8      # partial unroll keeps LLO visibility

    def kernel(gx_ref, whh_ref, wlin_ref, blin_ref, out_ref, h_sc, c_sc):
        t_blk = pl.program_id(0)

        @pl.when(t_blk == 0)
        def _init():
            h_sc[...] = jnp.zeros_like(h_sc)
            c_sc[...] = jnp.zeros_like(c_sc)

        def step(i, carry):
            h, c = carry
            # per-step work: tiny bf16 (B,HP)@(HP,G4) matmul (whh streamed
            # from VMEM, no f32 register hoist) + f32 elementwise gate math.
            gates = (gx_ref[i].astype(jnp.float32)
                     + jnp.dot(h.astype(jnp.bfloat16), whh_ref[...],
                               preferred_element_type=jnp.float32))
            sig = jax.nn.sigmoid(gates[:, :3 * HP])   # i|f|o lane-contiguous
            i_g = sig[:, 0 * HP:1 * HP]
            f_g = sig[:, 1 * HP:2 * HP]
            o_g = sig[:, 2 * HP:3 * HP]
            g_g = jnp.tanh(gates[:, 3 * HP:4 * HP])
            c_new = f_g * c + i_g * g_g
            h_new = o_g * jnp.tanh(c_new)
            if tail_mask:              # only traced when T % Tc != 0
                valid = (t_blk * Tc + i) < T
                h_new = jnp.where(valid, h_new, h)
                c_new = jnp.where(valid, c_new, c)
            return h_new, c_new

        h, c = lax.fori_loop(0, Tc, step, (h_sc[...], c_sc[...]),
                             unroll=unroll)
        h_sc[...] = h
        c_sc[...] = c

        @pl.when(t_blk == pl.num_programs(0) - 1)
        def _finalize():
            logits = (jnp.dot(h, wlin_ref[...],
                              preferred_element_type=jnp.float32)
                      + blin_ref[...])
            out_ref[...] = jax.nn.sigmoid(logits)     # (B, NP) lane-dense store

    return pl.pallas_call(
        kernel,
        out_shape=jax.ShapeDtypeStruct((B, NP), jnp.float32),
        grid_spec=pltpu.PrefetchScalarGridSpec(
            num_scalar_prefetch=0,
            grid=(grid_t,),
            in_specs=[
                pl.BlockSpec((Tc, B, G4), lambda t: (t, 0, 0)),
                pl.BlockSpec((HP, G4), lambda t: (0, 0)),
                pl.BlockSpec((HP, NP), lambda t: (0, 0)),
                pl.BlockSpec((1, NP), lambda t: (0, 0)),
            ],
            out_specs=pl.BlockSpec((B, NP), lambda t: (0, 0)),
            scratch_shapes=[
                pltpu.VMEM((B, HP), jnp.float32),   # h carry
                pltpu.VMEM((B, HP), jnp.float32),   # c carry
            ],
        ),
        compiler_params=pltpu.CompilerParams(
            dimension_semantics=("arbitrary",)),
    )(gx_tbg, whh_bf16, wlin_pad, blin_pad)


# --------------------------------------------------------------------------
# One-time weight packing (hoisted out of the per-call path)
# --------------------------------------------------------------------------
def pack_params(params):
    """Pack LSTM + Linear weights into lane-padded MXU layouts (i|f|o|g)."""
    wih_t = params["w_ih"].T                # (768, 4H)
    whh_t = params["w_hh"].T                # (H,   4H)
    b = params["b_ih"] + params["b_hh"]     # (4H,)

    wih_pad = jnp.zeros((D_IN, G4), jnp.float32)
    whh_pad = jnp.zeros((HP, G4), jnp.float32)
    b_pad = jnp.zeros((1, G4), jnp.float32)
    for dst, src in enumerate(_GATE_SRC_FOR_DST):
        wih_pad = wih_pad.at[:, dst * HP:dst * HP + H].set(
            wih_t[:, src * H:(src + 1) * H])
        whh_pad = whh_pad.at[:H, dst * HP:dst * HP + H].set(
            whh_t[:, src * H:(src + 1) * H])
        b_pad = b_pad.at[:, dst * HP:dst * HP + H].set(
            b[src * H:(src + 1) * H])

    wlin_pad = jnp.zeros((HP, NP), jnp.float32).at[:H, :N_OUT].set(
        params["w_lin"].T)
    blin_pad = jnp.zeros((1, NP), jnp.float32).at[:, :N_OUT].set(
        params["b_lin"])

    return {
        "wih": wih_pad.astype(jnp.bfloat16),    # bf16 MXU operand, kernel 1
        "whh": whh_pad.astype(jnp.bfloat16),    # bf16 MXU operand, kernel 2
        "b": b_pad,
        "wlin": wlin_pad,
        "blin": blin_pad,
    }


# --------------------------------------------------------------------------
# Forward wrapper
# --------------------------------------------------------------------------
def lstm_classifier_forward(emb_btd, packed):
    """emb_btd: [B, T, 768] float32 (like embedder(...).last_hidden_state)."""
    B, T, D = emb_btd.shape
    assert D == D_IN

    # 1) hoisted input projection on the batch-first layout (no big transpose,
    #    no big pad; bf16 cast happens inside the kernel).
    gates2d = _input_projection(emb_btd.reshape(B * T, D_IN),
                                packed["wih"], packed["b"])

    # 2) only the 12x-smaller bf16 gates tensor is transposed to time-major.
    gates_tbg = jnp.transpose(gates2d.reshape(B, T, G4), (1, 0, 2))  # (T,B,G4)

    out_full = _lstm_head(gates_tbg, packed["whh"],
                          packed["wlin"], packed["blin"])
    return out_full[:, :N_OUT]


# --------------------------------------------------------------------------
# Pure-JAX f32 reference (same LSTM + Linear + sigmoid semantics)
# --------------------------------------------------------------------------
def _reference_forward(emb_btd, params):
    B = emb_btd.shape[0]
    w_ih, w_hh = params["w_ih"], params["w_hh"]
    b = params["b_ih"] + params["b_hh"]

    def step(carry, x_t):
        h, c = carry
        gates = x_t @ w_ih.T + h @ w_hh.T + b
        i = jax.nn.sigmoid(gates[:, 0 * H:1 * H])
        f = jax.nn.sigmoid(gates[:, 1 * H:2 * H])
        g = jnp.tanh(gates[:, 2 * H:3 * H])
        o = jax.nn.sigmoid(gates[:, 3 * H:4 * H])
        c = f * c + i * g
        h = o * jnp.tanh(c)
        return (h, c), None

    h0 = jnp.zeros((B, H), jnp.float32)
    c0 = jnp.zeros((B, H), jnp.float32)
    (h, _), _ = jax.lax.scan(step, (h0, c0), jnp.transpose(emb_btd, (1, 0, 2)))
    return jax.nn.sigmoid(h @ params["w_lin"].T + params["b_lin"])


def init_params(key):
    ks = jax.random.split(key, 6)
    s = 0.05
    return {
        "w_ih": s * jax.random.normal(ks[0], (4 * H, D_IN), jnp.float32),
        "w_hh": s * jax.random.normal(ks[1], (4 * H, H), jnp.float32),
        "b_ih": s * jax.random.normal(ks[2], (4 * H,), jnp.float32),
        "b_hh": s * jax.random.normal(ks[3], (4 * H,), jnp.float32),
        "w_lin": s * jax.random.normal(ks[4], (N_OUT, H), jnp.float32),
        "b_lin": s * jax.random.normal(ks[5], (N_OUT,), jnp.float32),
    }


if __name__ == "__main__":
    key = jax.random.PRNGKey(0)
    k_emb, k_par = jax.random.split(key)

    B, T = 2, 8  # small batch / seq consistent with max_length-truncated text
    # Synthetic stand-in for embedder(...).last_hidden_state  [B, T, 768]
    emb = jax.random.normal(k_emb, (B, T, D_IN), jnp.float32)
    params = init_params(k_par)

    packed = pack_params(params)          # one-time packing, outside jit path
    fwd = jax.jit(lstm_classifier_forward)
    out = jax.block_until_ready(fwd(emb, packed))

    ref = _reference_forward(emb, params)
    assert out.shape == (B, N_OUT)
    # bf16 MXU operands (projection + recurrence) and a bf16 gates
    # intermediate vs the f32 reference -> relaxed tolerance.
    assert jnp.allclose(out, ref, atol=2e-2, rtol=2e-2), (out, ref)

    print("KERNEL_OK")
</pallas_src>

<mosaic_0001>
module attributes {stable_mosaic.version = 11 : i64} {
  func.func @_proj_kernel(%arg0: i32, %arg1: memref<16x768xf32, #tpu.memory_space<vmem>>, %arg2: memref<768x512xbf16, #tpu.memory_space<vmem>>, %arg3: memref<1x512xf32, #tpu.memory_space<vmem>>, %arg4: memref<16x512xbf16, #tpu.memory_space<vmem>>) attributes {dimension_semantics = [#tpu.dimension_semantics<parallel>], iteration_bounds = array<i64: 1>, scalar_prefetch = 0 : i64, scratch_operands = 0 : i64, tpu.core_type = #tpu.core_type<tc>, window_params = [{transform_indices = @transform_0, window_bounds = array<i64: 16, 768>}, {pipeline_mode = #tpu.pipeline_mode<synchronous>, transform_indices = @transform_1, window_bounds = array<i64: 768, 512>}, {pipeline_mode = #tpu.pipeline_mode<synchronous>, transform_indices = @transform_2, window_bounds = array<i64: 1, 512>}, {transform_indices = @transform_3, window_bounds = array<i64: 16, 512>}]} {
    %c0 = arith.constant 0 : index
    %c0_0 = arith.constant 0 : index
    %0 = vector.load %arg1[%c0, %c0_0] : memref<16x768xf32, #tpu.memory_space<vmem>>, vector<16x768xf32>
    %1 = arith.truncf %0 : vector<16x768xf32> to vector<16x768xbf16>
    %c0_1 = arith.constant 0 : index
    %c0_2 = arith.constant 0 : index
    %2 = vector.load %arg2[%c0_1, %c0_2] : memref<768x512xbf16, #tpu.memory_space<vmem>>, vector<768x512xbf16>
    %cst = arith.constant dense<0.000000e+00> : vector<16x512xf32>
    %3 = tpu.matmul %1, %2, %cst {dimension_numbers = #tpu.dot_dimension_numbers<[1], [0], [0], [1], [0, 0, 1, 1], [], []>} : vector<16x768xbf16>, vector<768x512xbf16>, vector<16x512xf32> -> vector<16x512xf32>
    %c0_3 = arith.constant 0 : index
    %c0_4 = arith.constant 0 : index
    %4 = vector.load %arg3[%c0_3, %c0_4] : memref<1x512xf32, #tpu.memory_space<vmem>>, vector<1x512xf32>
    %5 = vector.broadcast %4 : vector<1x512xf32> to vector<16x512xf32>
    %6 = arith.addf %3, %5 : vector<16x512xf32>
    %7 = arith.truncf %6 : vector<16x512xf32> to vector<16x512xbf16>
    %c0_5 = arith.constant 0 : index
    %c0_6 = arith.constant 0 : index
    %8 = vector.load %arg4[%c0_5, %c0_6] : memref<16x512xbf16, #tpu.memory_space<vmem>>, vector<16x512xbf16>
    tpu.vector_store %arg4[%c0_5, %c0_6], %7 {strides = array<i32>} : memref<16x512xbf16, #tpu.memory_space<vmem>>, vector<16x512xbf16>,
    return
  }
  func.func @transform_0(%arg0: i32) -> (i32, i32) {
    %c0_i32 = arith.constant 0 : i32
    %c0_i32_0 = arith.constant 0 : i32
    return %arg0, %c0_i32 : i32, i32
  }
  func.func @transform_1(%arg0: i32) -> (i32, i32) {
    %c0_i32 = arith.constant 0 : i32
    %c0_i32_0 = arith.constant 0 : i32
    %c0_i32_1 = arith.constant 0 : i32
    return %c0_i32, %c0_i32_0 : i32, i32
  }
  func.func @transform_2(%arg0: i32) -> (i32, i32) {
    %c0_i32 = arith.constant 0 : i32
    %c0_i32_0 = arith.constant 0 : i32
    %c0_i32_1 = arith.constant 0 : i32
    return %c0_i32, %c0_i32_0 : i32, i32
  }
  func.func @transform_3(%arg0: i32) -> (i32, i32) {
    %c0_i32 = arith.constant 0 : i32
    %c0_i32_0 = arith.constant 0 : i32
    return %arg0, %c0_i32 : i32, i32
  }
}

module attributes {stable_mosaic.version = 11 : i64} {
  func.func @kernel(%arg0: i32, %arg1: memref<8x2x512xbf16, #tpu.memory_space<vmem>>, %arg2: memref<128x512xbf16, #tpu.memory_space<vmem>>, %arg3: memref<128x128xf32, #tpu.memory_space<vmem>>, %arg4: memref<1x128xf32, #tpu.memory_space<vmem>>, %arg5: memref<2x128xf32, #tpu.memory_space<vmem>>, %arg6: memref<2x128xf32, #tpu.memory_space<vmem>>, %arg7: memref<2x128xf32, #tpu.memory_space<vmem>>) attributes {dimension_semantics = [#tpu.dimension_semantics<arbitrary>], iteration_bounds = array<i64: 1>, scalar_prefetch = 0 : i64, scratch_operands = 2 : i64, tpu.core_type = #tpu.core_type<tc>, window_params = [{transform_indices = @transform_0, window_bounds = array<i64: 8, 2, 512>}, {pipeline_mode = #tpu.pipeline_mode<synchronous>, transform_indices = @transform_1, window_bounds = array<i64: 128, 512>}, {pipeline_mode = #tpu.pipeline_mode<synchronous>, transform_indices = @transform_2, window_bounds = array<i64: 128, 128>}, {pipeline_mode = #tpu.pipeline_mode<synchronous>, transform_indices = @transform_3, window_bounds = array<i64: 1, 128>}, {pipeline_mode = #tpu.pipeline_mode<synchronous>, transform_indices = @transform_4, window_bounds = array<i64: 2, 128>}]} {
    %c0_i32 = arith.constant 0 : i32
    %0 = arith.cmpi eq, %arg0, %c0_i32 : i32
    %1 = arith.extui %0 : i1 to i32
    %c0_i32_0 = arith.constant 0 : i32
    %2 = arith.cmpi ne, %1, %c0_i32_0 : i32
    scf.if %2 {
      %cst_58 = arith.constant 0.000000e+00 : f32
      %202 = vector.broadcast %cst_58 : f32 to vector<2x128xf32>
      %c0_59 = arith.constant 0 : index
      %c0_60 = arith.constant 0 : index
      %203 = vector.load %arg6[%c0_59, %c0_60] : memref<2x128xf32, #tpu.memory_space<vmem>>, vector<2x128xf32>
      tpu.vector_store %arg6[%c0_59, %c0_60], %202 {strides = array<i32>} : memref<2x128xf32, #tpu.memory_space<vmem>>, vector<2x128xf32>,
      %cst_61 = arith.constant 0.000000e+00 : f32
      %204 = vector.broadcast %cst_61 : f32 to vector<2x128xf32>
      %c0_62 = arith.constant 0 : index
      %c0_63 = arith.constant 0 : index
      %205 = vector.load %arg7[%c0_62, %c0_63] : memref<2x128xf32, #tpu.memory_space<vmem>>, vector<2x128xf32>
      tpu.vector_store %arg7[%c0_62, %c0_63], %204 {strides = array<i32>} : memref<2x128xf32, #tpu.memory_space<vmem>>, vector<2x128xf32>,
    } else {
    }
    %c0 = arith.constant 0 : index
    %c0_1 = arith.constant 0 : index
    %3 = vector.load %arg6[%c0, %c0_1] : memref<2x128xf32, #tpu.memory_space<vmem>>, vector<2x128xf32>
    %c0_2 = arith.constant 0 : index
    %c0_3 = arith.constant 0 : index
    %4 = vector.load %arg7[%c0_2, %c0_3] : memref<2x128xf32, #tpu.memory_space<vmem>>, vector<2x128xf32>
    %c0_i32_4 = arith.constant 0 : i32
    %5 = arith.index_cast %c0_i32_4 : i32 to index
    %c0_5 = arith.constant 0 : index
    %c0_6 = arith.constant 0 : index
    %6 = vector.load %arg1[%5, %c0_5, %c0_6] : memref<8x2x512xbf16, #tpu.memory_space<vmem>>, vector<1x2x512xbf16>
    %7 = vector.shape_cast %6 : vector<1x2x512xbf16> to vector<2x512xbf16>
    %8 = arith.extf %7 : vector<2x512xbf16> to vector<2x512xf32>
    %9 = arith.truncf %3 : vector<2x128xf32> to vector<2x128xbf16>
    %c0_7 = arith.constant 0 : index
    %c0_8 = arith.constant 0 : index
    %10 = vector.load %arg2[%c0_7, %c0_8] : memref<128x512xbf16, #tpu.memory_space<vmem>>, vector<128x512xbf16>
    %cst = arith.constant dense<0.000000e+00> : vector<2x512xf32>
    %11 = tpu.matmul %9, %10, %cst {dimension_numbers = #tpu.dot_dimension_numbers<[1], [0], [0], [1], [0, 0, 1, 1], [], []>} : vector<2x128xbf16>, vector<128x512xbf16>, vector<2x512xf32> -> vector<2x512xf32>
    %12 = arith.addf %8, %11 : vector<2x512xf32>
    %13 = vector.extract_strided_slice %12 {offsets = [0, 0], sizes = [2, 384], strides = [1, 1]} : vector<2x512xf32> to vector<2x384xf32>
    %14 = arith.negf %13 : vector<2x384xf32>
    %15 = math.exp %14 : vector<2x384xf32>
    %cst_9 = arith.constant 1.000000e+00 : f32
    %16 = vector.broadcast %cst_9 : f32 to vector<2x384xf32>
    %17 = arith.addf %16, %15 : vector<2x384xf32>
    %18 = arith.divf %16, %17 : vector<2x384xf32>
    %19 = vector.extract_strided_slice %18 {offsets = [0, 0], sizes = [2, 128], strides = [1, 1]} : vector<2x384xf32> to vector<2x128xf32>
    %20 = vector.extract_strided_slice %18 {offsets = [0, 128], sizes = [2, 128], strides = [1, 1]} : vector<2x384xf32> to vector<2x128xf32>
    %21 = vector.extract_strided_slice %18 {offsets = [0, 256], sizes = [2, 128], strides = [1, 1]} : vector<2x384xf32> to vector<2x128xf32>
    %22 = vector.extract_strided_slice %12 {offsets = [0, 384], sizes = [2, 128], strides = [1, 1]} : vector<2x512xf32> to vector<2x128xf32>
    %23 = math.tanh %22 : vector<2x128xf32>
    %24 = arith.mulf %20, %4 : vector<2x128xf32>
    %25 = arith.mulf %19, %23 : vector<2x128xf32>
    %26 = arith.addf %24, %25 : vector<2x128xf32>
    %27 = math.tanh %26 : vector<2x128xf32>
    %28 = arith.mulf %21, %27 : vector<2x128xf32>
    %c1_i32 = arith.constant 1 : i32
    %29 = arith.index_cast %c1_i32 : i32 to index
    %c0_10 = arith.constant 0 : index
    %c0_11 = arith.constant 0 : index
    %30 = vector.load %arg1[%29, %c0_10, %c0_11] : memref<8x2x512xbf16, #tpu.memory_space<vmem>>, vector<1x2x512xbf16>
    %31 = vector.shape_cast %30 : vector<1x2x512xbf16> to vector<2x512xbf16>
    %32 = arith.extf %31 : vector<2x512xbf16> to vector<2x512xf32>
    %33 = arith.truncf %28 : vector<2x128xf32> to vector<2x128xbf16>
    %c0_12 = arith.constant 0 : index
    %c0_13 = arith.constant 0 : index
    %34 = vector.load %arg2[%c0_12, %c0_13] : memref<128x512xbf16, #tpu.memory_space<vmem>>, vector<128x512xbf16>
    %cst_14 = arith.constant dense<0.000000e+00> : vector<2x512xf32>
    %35 = tpu.matmul %33, %34, %cst_14 {dimension_numbers = #tpu.dot_dimension_numbers<[1], [0], [0], [1], [0, 0, 1, 1], [], []>} : vector<2x128xbf16>, vector<128x512xbf16>, vector<2x512xf32> -> vector<2x512xf32>
    %36 = arith.addf %32, %35 : vector<2x512xf32>
    %37 = vector.extract_strided_slice %36 {offsets = [0, 0], sizes = [2, 384], strides = [1, 1]} : vector<2x512xf32> to vector<2x384xf32>
    %38 = arith.negf %37 : vector<2x384xf32>
    %39 = math.exp %38 : vector<2x384xf32>
    %cst_15 = arith.constant 1.000000e+00 : f32
    %40 = vector.broadcast %cst_15 : f32 to vector<2x384xf32>
    %41 = arith.addf %40, %39 : vector<2x384xf32>
    %42 = arith.divf %40, %41 : vector<2x384xf32>
    %43 = vector.extract_strided_slice %42 {offsets = [0, 0], sizes = [2, 128], strides = [1, 1]} : vector<2x384xf32> to vector<2x128xf32>
    %44 = vector.extract_strided_slice %42 {offsets = [0, 128], sizes = [2, 128], strides = [1, 1]} : vector<2x384xf32> to vector<2x128xf32>
    %45 = vector.extract_strided_slice %42 {offsets = [0, 256], sizes = [2, 128], strides = [1, 1]} : vector<2x384xf32> to vector<2x128xf32>
    %46 = vector.extract_strided_slice %36 {offsets = [0, 384], sizes = [2, 128], strides = [1, 1]} : vector<2x512xf32> to vector<2x128xf32>
    %47 = math.tanh %46 : vector<2x128xf32>
    %48 = arith.mulf %44, %26 : vector<2x128xf32>
    %49 = arith.mulf %43, %47 : vector<2x128xf32>
    %50 = arith.addf %48, %49 : vector<2x128xf32>
    %51 = math.tanh %50 : vector<2x128xf32>
    %52 = arith.mulf %45, %51 : vector<2x128xf32>
    %c2_i32 = arith.constant 2 : i32
    %53 = arith.index_cast %c2_i32 : i32 to index
    %c0_16 = arith.constant 0 : index
    %c0_17 = arith.constant 0 : index
    %54 = vector.load %arg1[%53, %c0_16, %c0_17] : memref<8x2x512xbf16, #tpu.memory_space<vmem>>, vector<1x2x512xbf16>
    %55 = vector.shape_cast %54 : vector<1x2x512xbf16> to vector<2x512xbf16>
    %56 = arith.extf %55 : vector<2x512xbf16> to vector<2x512xf32>
    %57 = arith.truncf %52 : vector<2x128xf32> to vector<2x128xbf16>
    %c0_18 = arith.constant 0 : index
    %c0_19 = arith.constant 0 : index
    %58 = vector.load %arg2[%c0_18, %c0_19] : memref<128x512xbf16, #tpu.memory_space<vmem>>, vector<128x512xbf16>
    %cst_20 = arith.constant dense<0.000000e+00> : vector<2x512xf32>
    %59 = tpu.matmul %57, %58, %cst_20 {dimension_numbers = #tpu.dot_dimension_numbers<[1], [0], [0], [1], [0, 0, 1, 1], [], []>} : vector<2x128xbf16>, vector<128x512xbf16>, vector<2x512xf32> -> vector<2x512xf32>
    %60 = arith.addf %56, %59 : vector<2x512xf32>
    %61 = vector.extract_strided_slice %60 {offsets = [0, 0], sizes = [2, 384], strides = [1, 1]} : vector<2x512xf32> to vector<2x384xf32>
    %62 = arith.negf %61 : vector<2x384xf32>
    %63 = math.exp %62 : vector<2x384xf32>
    %cst_21 = arith.constant 1.000000e+00 : f32
    %64 = vector.broadcast %cst_21 : f32 to vector<2x384xf32>
    %65 = arith.addf %64, %63 : vector<2x384xf32>
    %66 = arith.divf %64, %65 : vector<2x384xf32>
    %67 = vector.extract_strided_slice %66 {offsets = [0, 0], sizes = [2, 128], strides = [1, 1]} : vector<2x384xf32> to vector<2x128xf32>
    %68 = vector.extract_strided_slice %66 {offsets = [0, 128], sizes = [2, 128], strides = [1, 1]} : vector<2x384xf32> to vector<2x128xf32>
    %69 = vector.extract_strided_slice %66 {offsets = [0, 256], sizes = [2, 128], strides = [1, 1]} : vector<2x384xf32> to vector<2x128xf32>
    %70 = vector.extract_strided_slice %60 {offsets = [0, 384], sizes = [2, 128], strides = [1, 1]} : vector<2x512xf32> to vector<2x128xf32>
    %71 = math.tanh %70 : vector<2x128xf32>
    %72 = arith.mulf %68, %50 : vector<2x128xf32>
    %73 = arith.mulf %67, %71 : vector<2x128xf32>
    %74 = arith.addf %72, %73 : vector<2x128xf32>
    %75 = math.tanh %74 : vector<2x128xf32>
    %76 = arith.mulf %69, %75 : vector<2x128xf32>
    %c3_i32 = arith.constant 3 : i32
    %77 = arith.index_cast %c3_i32 : i32 to index
    %c0_22 = arith.constant 0 : index
    %c0_23 = arith.constant 0 : index
    %78 = vector.load %arg1[%77, %c0_22, %c0_23] : memref<8x2x512xbf16, #tpu.memory_space<vmem>>, vector<1x2x512xbf16>
    %79 = vector.shape_cast %78 : vector<1x2x512xbf16> to vector<2x512xbf16>
    %80 = arith.extf %79 : vector<2x512xbf16> to vector<2x512xf32>
    %81 = arith.truncf %76 : vector<2x128xf32> to vector<2x128xbf16>
    %c0_24 = arith.constant 0 : index
    %c0_25 = arith.constant 0 : index
    %82 = vector.load %arg2[%c0_24, %c0_25] : memref<128x512xbf16, #tpu.memory_space<vmem>>, vector<128x512xbf16>
    %cst_26 = arith.constant dense<0.000000e+00> : vector<2x512xf32>
    %83 = tpu.matmul %81, %82, %cst_26 {dimension_numbers = #tpu.dot_dimension_numbers<[1], [0], [0], [1], [0, 0, 1, 1], [], []>} : vector<2x128xbf16>, vector<128x512xbf16>, vector<2x512xf32> -> vector<2x512xf32>
    %84 = arith.addf %80, %83 : vector<2x512xf32>
    %85 = vector.extract_strided_slice %84 {offsets = [0, 0], sizes = [2, 384], strides = [1, 1]} : vector<2x512xf32> to vector<2x384xf32>
    %86 = arith.negf %85 : vector<2x384xf32>
    %87 = math.exp %86 : vector<2x384xf32>
    %cst_27 = arith.constant 1.000000e+00 : f32
    %88 = vector.broadcast %cst_27 : f32 to vector<2x384xf32>
    %89 = arith.addf %88, %87 : vector<2x384xf32>
    %90 = arith.divf %88, %89 : vector<2x384xf32>
    %91 = vector.extract_strided_slice %90 {offsets = [0, 0], sizes = [2, 128], strides = [1, 1]} : vector<2x384xf32> to vector<2x128xf32>
    %92 = vector.extract_strided_slice %90 {offsets = [0, 128], sizes = [2, 128], strides = [1, 1]} : vector<2x384xf32> to vector<2x128xf32>
    %93 = vector.extract_strided_slice %90 {offsets = [0, 256], sizes = [2, 128], strides = [1, 1]} : vector<2x384xf32> to vector<2x128xf32>
    %94 = vector.extract_strided_slice %84 {offsets = [0, 384], sizes = [2, 128], strides = [1, 1]} : vector<2x512xf32> to vector<2x128xf32>
    %95 = math.tanh %94 : vector<2x128xf32>
    %96 = arith.mulf %92, %74 : vector<2x128xf32>
    %97 = arith.mulf %91, %95 : vector<2x128xf32>
    %98 = arith.addf %96, %97 : vector<2x128xf32>
    %99 = math.tanh %98 : vector<2x128xf32>
    %100 = arith.mulf %93, %99 : vector<2x128xf32>
    %c4_i32 = arith.constant 4 : i32
    %101 = arith.index_cast %c4_i32 : i32 to index
    %c0_28 = arith.constant 0 : index
    %c0_29 = arith.constant 0 : index
    %102 = vector.load %arg1[%101, %c0_28, %c0_29] : memref<8x2x512xbf16, #tpu.memory_space<vmem>>, vector<1x2x512xbf16>
    %103 = vector.shape_cast %102 : vector<1x2x512xbf16> to vector<2x512xbf16>
    %104 = arith.extf %103 : vector<2x512xbf16> to vector<2x512xf32>
    %105 = arith.truncf %100 : vector<2x128xf32> to vector<2x128xbf16>
    %c0_30 = arith.constant 0 : index
    %c0_31 = arith.constant 0 : index
    %106 = vector.load %arg2[%c0_30, %c0_31] : memref<128x512xbf16, #tpu.memory_space<vmem>>, vector<128x512xbf16>
    %cst_32 = arith.constant dense<0.000000e+00> : vector<2x512xf32>
    %107 = tpu.matmul %105, %106, %cst_32 {dimension_numbers = #tpu.dot_dimension_numbers<[1], [0], [0], [1], [0, 0, 1, 1], [], []>} : vector<2x128xbf16>, vector<128x512xbf16>, vector<2x512xf32> -> vector<2x512xf32>
    %108 = arith.addf %104, %107 : vector<2x512xf32>
    %109 = vector.extract_strided_slice %108 {offsets = [0, 0], sizes = [2, 384], strides = [1, 1]} : vector<2x512xf32> to vector<2x384xf32>
    %110 = arith.negf %109 : vector<2x384xf32>
    %111 = math.exp %110 : vector<2x384xf32>
    %cst_33 = arith.constant 1.000000e+00 : f32
    %112 = vector.broadcast %cst_33 : f32 to vector<2x384xf32>
    %113 = arith.addf %112, %111 : vector<2x384xf32>
    %114 = arith.divf %112, %113 : vector<2x384xf32>
    %115 = vector.extract_strided_slice %114 {offsets = [0, 0], sizes = [2, 128], strides = [1, 1]} : vector<2x384xf32> to vector<2x128xf32>
    %116 = vector.extract_strided_slice %114 {offsets = [0, 128], sizes = [2, 128], strides = [1, 1]} : vector<2x384xf32> to vector<2x128xf32>
    %117 = vector.extract_strided_slice %114 {offsets = [0, 256], sizes = [2, 128], strides = [1, 1]} : vector<2x384xf32> to vector<2x128xf32>
    %118 = vector.extract_strided_slice %108 {offsets = [0, 384], sizes = [2, 128], strides = [1, 1]} : vector<2x512xf32> to vector<2x128xf32>
    %119 = math.tanh %118 : vector<2x128xf32>
    %120 = arith.mulf %116, %98 : vector<2x128xf32>
    %121 = arith.mulf %115, %119 : vector<2x128xf32>
    %122 = arith.addf %120, %121 : vector<2x128xf32>
    %123 = math.tanh %122 : vector<2x128xf32>
    %124 = arith.mulf %117, %123 : vector<2x128xf32>
    %c5_i32 = arith.constant 5 : i32
    %125 = arith.index_cast %c5_i32 : i32 to index
    %c0_34 = arith.constant 0 : index
    %c0_35 = arith.constant 0 : index
    %126 = vector.load %arg1[%125, %c0_34, %c0_35] : memref<8x2x512xbf16, #tpu.memory_space<vmem>>, vector<1x2x512xbf16>
    %127 = vector.shape_cast %126 : vector<1x2x512xbf16> to vector<2x512xbf16>
    %128 = arith.extf %127 : vector<2x512xbf16> to vector<2x512xf32>
    %129 = arith.truncf %124 : vector<2x128xf32> to vector<2x128xbf16>
    %c0_36 = arith.constant 0 : index
    %c0_37 = arith.constant 0 : index
    %130 = vector.load %arg2[%c0_36, %c0_37] : memref<128x512xbf16, #tpu.memory_space<vmem>>, vector<128x512xbf16>
    %cst_38 = arith.constant dense<0.000000e+00> : vector<2x512xf32>
    %131 = tpu.matmul %129, %130, %cst_38 {dimension_numbers = #tpu.dot_dimension_numbers<[1], [0], [0], [1], [0, 0, 1, 1], [], []>} : vector<2x128xbf16>, vector<128x512xbf16>, vector<2x512xf32> -> vector<2x512xf32>
    %132 = arith.addf %128, %131 : vector<2x512xf32>
    %133 = vector.extract_strided_slice %132 {offsets = [0, 0], sizes = [2, 384], strides = [1, 1]} : vector<2x512xf32> to vector<2x384xf32>
    %134 = arith.negf %133 : vector<2x384xf32>
    %135 = math.exp %134 : vector<2x384xf32>
    %cst_39 = arith.constant 1.000000e+00 : f32
    %136 = vector.broadcast %cst_39 : f32 to vector<2x384xf32>
    %137 = arith.addf %136, %135 : vector<2x384xf32>
    %138 = arith.divf %136, %137 : vector<2x384xf32>
    %139 = vector.extract_strided_slice %138 {offsets = [0, 0], sizes = [2, 128], strides = [1, 1]} : vector<2x384xf32> to vector<2x128xf32>
    %140 = vector.extract_strided_slice %138 {offsets = [0, 128], sizes = [2, 128], strides = [1, 1]} : vector<2x384xf32> to vector<2x128xf32>
    %141 = vector.extract_strided_slice %138 {offsets = [0, 256], sizes = [2, 128], strides = [1, 1]} : vector<2x384xf32> to vector<2x128xf32>
    %142 = vector.extract_strided_slice %132 {offsets = [0, 384], sizes = [2, 128], strides = [1, 1]} : vector<2x512xf32> to vector<2x128xf32>
    %143 = math.tanh %142 : vector<2x128xf32>
    %144 = arith.mulf %140, %122 : vector<2x128xf32>
    %145 = arith.mulf %139, %143 : vector<2x128xf32>
    %146 = arith.addf %144, %145 : vector<2x128xf32>
    %147 = math.tanh %146 : vector<2x128xf32>
    %148 = arith.mulf %141, %147 : vector<2x128xf32>
    %c6_i32 = arith.constant 6 : i32
    %149 = arith.index_cast %c6_i32 : i32 to index
    %c0_40 = arith.constant 0 : index
    %c0_41 = arith.constant 0 : index
    %150 = vector.load %arg1[%149, %c0_40, %c0_41] : memref<8x2x512xbf16, #tpu.memory_space<vmem>>, vector<1x2x512xbf16>
    %151 = vector.shape_cast %150 : vector<1x2x512xbf16> to vector<2x512xbf16>
    %152 = arith.extf %151 : vector<2x512xbf16> to vector<2x512xf32>
    %153 = arith.truncf %148 : vector<2x128xf32> to vector<2x128xbf16>
    %c0_42 = arith.constant 0 : index
    %c0_43 = arith.constant 0 : index
    %154 = vector.load %arg2[%c0_42, %c0_43] : memref<128x512xbf16, #tpu.memory_space<vmem>>, vector<128x512xbf16>
    %cst_44 = arith.constant dense<0.000000e+00> : vector<2x512xf32>
    %155 = tpu.matmul %153, %154, %cst_44 {dimension_numbers = #tpu.dot_dimension_numbers<[1], [0], [0], [1], [0, 0, 1, 1], [], []>} : vector<2x128xbf16>, vector<128x512xbf16>, vector<2x512xf32> -> vector<2x512xf32>
    %156 = arith.addf %152, %155 : vector<2x512xf32>
    %157 = vector.extract_strided_slice %156 {offsets = [0, 0], sizes = [2, 384], strides = [1, 1]} : vector<2x512xf32> to vector<2x384xf32>
    %158 = arith.negf %157 : vector<2x384xf32>
    %159 = math.exp %158 : vector<2x384xf32>
    %cst_45 = arith.constant 1.000000e+00 : f32
    %160 = vector.broadcast %cst_45 : f32 to vector<2x384xf32>
    %161 = arith.addf %160, %159 : vector<2x384xf32>
    %162 = arith.divf %160, %161 : vector<2x384xf32>
    %163 = vector.extract_strided_slice %162 {offsets = [0, 0], sizes = [2, 128], strides = [1, 1]} : vector<2x384xf32> to vector<2x128xf32>
    %164 = vector.extract_strided_slice %162 {offsets = [0, 128], sizes = [2, 128], strides = [1, 1]} : vector<2x384xf32> to vector<2x128xf32>
    %165 = vector.extract_strided_slice %162 {offsets = [0, 256], sizes = [2, 128], strides = [1, 1]} : vector<2x384xf32> to vector<2x128xf32>
    %166 = vector.extract_strided_slice %156 {offsets = [0, 384], sizes = [2, 128], strides = [1, 1]} : vector<2x512xf32> to vector<2x128xf32>
    %167 = math.tanh %166 : vector<2x128xf32>
    %168 = arith.mulf %164, %146 : vector<2x128xf32>
    %169 = arith.mulf %163, %167 : vector<2x128xf32>
    %170 = arith.addf %168, %169 : vector<2x128xf32>
    %171 = math.tanh %170 : vector<2x128xf32>
    %172 = arith.mulf %165, %171 : vector<2x128xf32>
    %c7_i32 = arith.constant 7 : i32
    %173 = arith.index_cast %c7_i32 : i32 to index
    %c0_46 = arith.constant 0 : index
    %c0_47 = arith.constant 0 : index
    %174 = vector.load %arg1[%173, %c0_46, %c0_47] : memref<8x2x512xbf16, #tpu.memory_space<vmem>>, vector<1x2x512xbf16>
    %175 = vector.shape_cast %174 : vector<1x2x512xbf16> to vector<2x512xbf16>
    %176 = arith.extf %175 : vector<2x512xbf16> to vector<2x512xf32>
    %177 = arith.truncf %172 : vector<2x128xf32> to vector<2x128xbf16>
    %c0_48 = arith.constant 0 : index
    %c0_49 = arith.constant 0 : index
    %178 = vector.load %arg2[%c0_48, %c0_49] : memref<128x512xbf16, #tpu.memory_space<vmem>>, vector<128x512xbf16>
    %cst_50 = arith.constant dense<0.000000e+00> : vector<2x512xf32>
    %179 = tpu.matmul %177, %178, %cst_50 {dimension_numbers = #tpu.dot_dimension_numbers<[1], [0], [0], [1], [0, 0, 1, 1], [], []>} : vector<2x128xbf16>, vector<128x512xbf16>, vector<2x512xf32> -> vector<2x512xf32>
    %180 = arith.addf %176, %179 : vector<2x512xf32>
    %181 = vector.extract_strided_slice %180 {offsets = [0, 0], sizes = [2, 384], strides = [1, 1]} : vector<2x512xf32> to vector<2x384xf32>
    %182 = arith.negf %181 : vector<2x384xf32>
    %183 = math.exp %182 : vector<2x384xf32>
    %cst_51 = arith.constant 1.000000e+00 : f32
    %184 = vector.broadcast %cst_51 : f32 to vector<2x384xf32>
    %185 = arith.addf %184, %183 : vector<2x384xf32>
    %186 = arith.divf %184, %185 : vector<2x384xf32>
    %187 = vector.extract_strided_slice %186 {offsets = [0, 0], sizes = [2, 128], strides = [1, 1]} : vector<2x384xf32> to vector<2x128xf32>
    %188 = vector.extract_strided_slice %186 {offsets = [0, 128], sizes = [2, 128], strides = [1, 1]} : vector<2x384xf32> to vector<2x128xf32>
    %189 = vector.extract_strided_slice %186 {offsets = [0, 256], sizes = [2, 128], strides = [1, 1]} : vector<2x384xf32> to vector<2x128xf32>
    %190 = vector.extract_strided_slice %180 {offsets = [0, 384], sizes = [2, 128], strides = [1, 1]} : vector<2x512xf32> to vector<2x128xf32>
    %191 = math.tanh %190 : vector<2x128xf32>
    %192 = arith.mulf %188, %170 : vector<2x128xf32>
    %193 = arith.mulf %187, %191 : vector<2x128xf32>
    %194 = arith.addf %192, %193 : vector<2x128xf32>
    %195 = math.tanh %194 : vector<2x128xf32>
    %196 = arith.mulf %189, %195 : vector<2x128xf32>
    %c8_i32 = arith.constant 8 : i32
    %c0_52 = arith.constant 0 : index
    %c0_53 = arith.constant 0 : index
    %197 = vector.load %arg6[%c0_52, %c0_53] : memref<2x128xf32, #tpu.memory_space<vmem>>, vector<2x128xf32>
    tpu.vector_store %arg6[%c0_52, %c0_53], %196 {strides = array<i32>} : memref<2x128xf32, #tpu.memory_space<vmem>>, vector<2x128xf32>,
    %c0_54 = arith.constant 0 : index
    %c0_55 = arith.constant 0 : index
    %198 = vector.load %arg7[%c0_54, %c0_55] : memref<2x128xf32, #tpu.memory_space<vmem>>, vector<2x128xf32>
    tpu.vector_store %arg7[%c0_54, %c0_55], %194 {strides = array<i32>} : memref<2x128xf32, #tpu.memory_space<vmem>>, vector<2x128xf32>,
    %c0_i32_56 = arith.constant 0 : i32
    %199 = arith.cmpi eq, %arg0, %c0_i32_56 : i32
    %200 = arith.extui %199 : i1 to i32
    %c0_i32_57 = arith.constant 0 : i32
    %201 = arith.cmpi ne, %200, %c0_i32_57 : i32
    scf.if %201 {
      %c0_58 = arith.constant 0 : index
      %c0_59 = arith.constant 0 : index
      %202 = vector.load %arg3[%c0_58, %c0_59] : memref<128x128xf32, #tpu.memory_space<vmem>>, vector<128x128xf32>
      %cst_60 = arith.constant dense<0.000000e+00> : vector<2x128xf32>
      %203 = tpu.matmul %196, %202, %cst_60 {dimension_numbers = #tpu.dot_dimension_numbers<[1], [0], [0], [1], [0, 0, 1, 1], [], []>} : vector<2x128xf32>, vector<128x128xf32>, vector<2x128xf32> -> vector<2x128xf32>
      %c0_61 = arith.constant 0 : index
      %c0_62 = arith.constant 0 : index
      %204 = vector.load %arg4[%c0_61, %c0_62] : memref<1x128xf32, #tpu.memory_space<vmem>>, vector<1x128xf32>
      %205 = vector.broadcast %204 : vector<1x128xf32> to vector<2x128xf32>
      %206 = arith.addf %203, %205 : vector<2x128xf32>
      %207 = arith.negf %206 : vector<2x128xf32>
      %208 = math.exp %207 : vector<2x128xf32>
      %cst_63 = arith.constant 1.000000e+00 : f32
      %209 = vector.broadcast %cst_63 : f32 to vector<2x128xf32>
      %210 = arith.addf %209, %208 : vector<2x128xf32>
      %211 = arith.divf %209, %210 : vector<2x128xf32>
      %c0_64 = arith.constant 0 : index
      %c0_65 = arith.constant 0 : index
      %212 = vector.load %arg5[%c0_64, %c0_65] : memref<2x128xf32, #tpu.memory_space<vmem>>, vector<2x128xf32>
      tpu.vector_store %arg5[%c0_64, %c0_65], %211 {strides = array<i32>} : memref<2x128xf32, #tpu.memory_space<vmem>>, vector<2x128xf32>,
    } else {
    }
    return
  }
  func.func @transform_0(%arg0: i32) -> (i32, i32, i32) {
    %c0_i32 = arith.constant 0 : i32
    %c0_i32_0 = arith.constant 0 : i32
    %c0_i32_1 = arith.constant 0 : i32
    return %arg0, %c0_i32, %c0_i32_0 : i32, i32, i32
  }
  func.func @transform_1(%arg0: i32) -> (i32, i32) {
    %c0_i32 = arith.constant 0 : i32
    %c0_i32_0 = arith.constant 0 : i32
    %c0_i32_1 = arith.constant 0 : i32
    return %c0_i32, %c0_i32_0 : i32, i32
  }
  func.func @transform_2(%arg0: i32) -> (i32, i32) {
    %c0_i32 = arith.constant 0 : i32
    %c0_i32_0 = arith.constant 0 : i32
    %c0_i32_1 = arith.constant 0 : i32
    return %c0_i32, %c0_i32_0 : i32, i32
  }
  func.func @transform_3(%arg0: i32) -> (i32, i32) {
    %c0_i32 = arith.constant 0 : i32
    %c0_i32_0 = arith.constant 0 : i32
    %c0_i32_1 = arith.constant 0 : i32
    return %c0_i32, %c0_i32_0 : i32, i32
  }
  func.func @transform_4(%arg0: i32) -> (i32, i32) {
    %c0_i32 = arith.constant 0 : i32
    %c0_i32_0 = arith.constant 0 : i32
    %c0_i32_1 = arith.constant 0 : i32
    return %c0_i32, %c0_i32_0 : i32, i32
  }
}

</mosaic_0001>

<llo_original>
// kernel: lstm_classifier_forward.3
$region0: #{lstm_classifier_forward.3}
  #allocation0 [shape = 'u32[]', space=smem, size = 0x4, offset = 0x4, fixed_abs, tag = 'smem constant byte address 0x4 - core index']
  #allocation1 [shape = 'u32[144,128]{1,0:T(1,128)}', space=vmem, size = 0x12000, scoped, tag = 'internal scratch']
  #allocation2 [shape = 'f32[2,128]{1,0:T(2,128)}', space=vmem, size = 0x400, scoped, tag = 'scratch operand']
  #allocation3 [shape = 'f32[2,128]{1,0:T(2,128)}', space=vmem, size = 0x400, scoped, tag = 'scratch operand']
  %s0 = inlined_call_operand.vmem [shape: bf16[8,2,512], index: 0, kind: input, shape index: {}]
  %s1 = inlined_call_operand.vmem [shape: bf16[128,512], index: 1, kind: input, shape index: {}]
  %s2 = inlined_call_operand.vmem [shape: f32[128,128], index: 2, kind: input, shape index: {}]
  %s3 = inlined_call_operand.vmem [shape: f32[1,128], index: 3, kind: input, shape index: {}]
  %s4 = inlined_call_operand.hbm [shape: f32[2,128], index: 4, kind: output, shape index: {}]
  %s5 = sld [smem:[#allocation0]]
  $region34: #{lstm_classifier_forward.3} parent=0
    _
  %s7 = ssub.s32 1, %s5
  %s8 = scalar_select 0, %s7, %s5
  $region1: #{lstm_classifier_forward.3} parent=0
    #allocation4 [shape = 'u8[1024]{0}', space=vmem, size = 0x400, scoped, tag = 'output window, operand 0, single buffered']
    #allocation5 [shape = 's32[1]{0}', space=sflag, size = 0x4, scoped, tag = 'scoped memory for lstm_classifier_forward.3']
    %9 = vsyncpa [#allocation5], 0
    // Predicated region
    $region2: #{lstm_classifier_forward.3} parent=1 // pred_check
      _
    $region3: #{lstm_classifier_forward.3} parent=1 // pred_check_branch
      %11 = sbr.rel (0) target = $region5
    $region4: #{lstm_classifier_forward.3} parent=1 // pred_region
      _
    $region5: #{lstm_classifier_forward.3} parent=1 // pred_fallthru
      _
    // Predicated region
    $region6: #{lstm_classifier_forward.3} parent=1 // pred_check
      _
    $region7: #{lstm_classifier_forward.3} parent=1 // pred_check_branch
      %13 = sbr.rel (0) target = $region9
    $region8: #{lstm_classifier_forward.3} parent=1 // pred_region
      _
    $region9: #{lstm_classifier_forward.3} parent=1 // pred_fallthru
      _
    // Predicated region
    $region10: #{lstm_classifier_forward.3} parent=1 // pred_check
      _
    $region11: #{lstm_classifier_forward.3} parent=1 // pred_check_branch
      %15 = sbr.rel (0) target = $region13
    $region12: #{lstm_classifier_forward.3} parent=1 // pred_region
      _
    $region13: #{lstm_classifier_forward.3} parent=1 // pred_fallthru
      _
    // Predicated region
    $region14: #{lstm_classifier_forward.3} parent=1 // pred_check
      _
    $region15: #{lstm_classifier_forward.3} parent=1 // pred_check_branch
      %17 = sbr.rel (0) target = $region17
    $region16: #{lstm_classifier_forward.3} parent=1 // pred_region
      _
    $region17: #{lstm_classifier_forward.3} parent=1 // pred_fallthru
      _
    %p19 = scmp.eq.s32.totalorder 0, 0
    // Predicated region
    $region18: #{lstm_classifier_forward.3} parent=1 // pred_check
      %p20 = pneg %p19
    $region19: #{lstm_classifier_forward.3} parent=1 // pred_check_branch
      %22 = sbr.rel (%p20) target = $region21
    $region20: #{lstm_classifier_forward.3} parent=1 // pred_region
      %23 = vst [vmem:[#allocation2] sm:$0x3] 0.0
      %24 = vst [vmem:[#allocation3] sm:$0x3] 0.0
    $region21: #{lstm_classifier_forward.3} parent=1 // pred_fallthru
      _
    %v25 = vld [vmem:[#allocation2] sm:$0x3]
    %v26 = vld [vmem:[#allocation3] sm:$0x3]
    %v27 = vld [vmem:[%s0] sm:$0xf]
    %v28 = vunpack.c.l.bf16 %v27
    %v29 = vpack.c.bf16 %v25, %v25
    %v30 = vld [vmem:[%s1] sm:$0xff]
    %v31 = vld [vmem:[%s1 + $0x8] sm:$0xff]
    %v32 = vld [vmem:[%s1 + $0x10] sm:$0xff]
    %v33 = vld [vmem:[%s1 + $0x18] sm:$0xff]
    %v34 = vld [vmem:[%s1 + $0x20] sm:$0xff]
    %v35 = vld [vmem:[%s1 + $0x28] sm:$0xff]
    %v36 = vld [vmem:[%s1 + $0x30] sm:$0xff]
    %v37 = vld [vmem:[%s1 + $0x38] sm:$0xff]
    %v38 = vld [vmem:[%s1 + $0x40] sm:$0xff]
    %v39 = vld [vmem:[%s1 + $0x48] sm:$0xff]
    %v40 = vld [vmem:[%s1 + $0x50] sm:$0xff]
    %v41 = vld [vmem:[%s1 + $0x58] sm:$0xff]
    %v42 = vld [vmem:[%s1 + $0x60] sm:$0xff]
    %v43 = vld [vmem:[%s1 + $0x68] sm:$0xff]
    %v44 = vld [vmem:[%s1 + $0x70] sm:$0xff]
    %v45 = vld [vmem:[%s1 + $0x78] sm:$0xff]
    %v46 = vld [vmem:[%s1 + $0x80] sm:$0xff]
    %v47 = vld [vmem:[%s1 + $0x88] sm:$0xff]
    %v48 = vld [vmem:[%s1 + $0x90] sm:$0xff]
    %v49 = vld [vmem:[%s1 + $0x98] sm:$0xff]
    %v50 = vld [vmem:[%s1 + $0xa0] sm:$0xff]
    %v51 = vld [vmem:[%s1 + $0xa8] sm:$0xff]
    %v52 = vld [vmem:[%s1 + $0xb0] sm:$0xff]
    %v53 = vld [vmem:[%s1 + $0xb8] sm:$0xff]
    %v54 = vld [vmem:[%s1 + $0xc0] sm:$0xff]
    %v55 = vld [vmem:[%s1 + $0xc8] sm:$0xff]
    %v56 = vld [vmem:[%s1 + $0xd0] sm:$0xff]
    %v57 = vld [vmem:[%s1 + $0xd8] sm:$0xff]
    %v58 = vld [vmem:[%s1 + $0xe0] sm:$0xff]
    %v59 = vld [vmem:[%s1 + $0xe8] sm:$0xff]
    %v60 = vld [vmem:[%s1 + $0xf0] sm:$0xff]
    %v61 = vld [vmem:[%s1 + $0xf8] sm:$0xff]
    %v94 = vunpack.c.l.b16 %v30
    %v95 = vunpack.c.h.b16 %v30
    %v96 = vunpack.c.l.b16 %v31
    %v97 = vunpack.c.h.b16 %v31
    %v98 = vunpack.c.l.b16 %v32
    %v99 = vunpack.c.h.b16 %v32
    %v100 = vunpack.c.l.b16 %v33
    %v101 = vunpack.c.h.b16 %v33
    %v102 = vunpack.c.l.b16 %v34
    %v103 = vunpack.c.h.b16 %v34
    %v104 = vunpack.c.l.b16 %v35
    %v105 = vunpack.c.h.b16 %v35
    %v106 = vunpack.c.l.b16 %v36
    %v107 = vunpack.c.h.b16 %v36
    %v108 = vunpack.c.l.b16 %v37
    %v109 = vunpack.c.h.b16 %v37
    %v110 = vunpack.c.l.b16 %v38
    %v111 = vunpack.c.h.b16 %v38
    %v112 = vunpack.c.l.b16 %v39
    %v113 = vunpack.c.h.b16 %v39
    %v114 = vunpack.c.l.b16 %v40
    %v115 = vunpack.c.h.b16 %v40
    %v116 = vunpack.c.l.b16 %v41
    %v117 = vunpack.c.h.b16 %v41
    %v118 = vunpack.c.l.b16 %v42
    %v119 = vunpack.c.h.b16 %v42
    %v120 = vunpack.c.l.b16 %v43
    %v121 = vunpack.c.h.b16 %v43
    %v122 = vunpack.c.l.b16 %v44
    %v123 = vunpack.c.h.b16 %v44
    %v124 = vunpack.c.l.b16 %v45
    %v125 = vunpack.c.h.b16 %v45
    %v126 = vunpack.c.l.b16 %v46
    %v127 = vunpack.c.h.b16 %v46
    %v128 = vunpack.c.l.b16 %v47
    %v129 = vunpack.c.h.b16 %v47
    %v130 = vunpack.c.l.b16 %v48
    %v131 = vunpack.c.h.b16 %v48
    %v132 = vunpack.c.l.b16 %v49
    %v133 = vunpack.c.h.b16 %v49
    %v134 = vunpack.c.l.b16 %v50
    %v135 = vunpack.c.h.b16 %v50
    %v136 = vunpack.c.l.b16 %v51
    %v137 = vunpack.c.h.b16 %v51
    %v138 = vunpack.c.l.b16 %v52
    %v139 = vunpack.c.h.b16 %v52
    %v140 = vunpack.c.l.b16 %v53
    %v141 = vunpack.c.h.b16 %v53
    %v142 = vunpack.c.l.b16 %v54
    %v143 = vunpack.c.h.b16 %v54
    %v144 = vunpack.c.l.b16 %v55
    %v145 = vunpack.c.h.b16 %v55
    %v146 = vunpack.c.l.b16 %v56
    %v147 = vunpack.c.h.b16 %v56
    %v148 = vunpack.c.l.b16 %v57
    %v149 = vunpack.c.h.b16 %v57
    %v150 = vunpack.c.l.b16 %v58
    %v151 = vunpack.c.h.b16 %v58
    %v152 = vunpack.c.l.b16 %v59
    %v153 = vunpack.c.h.b16 %v59
    %v154 = vunpack.c.l.b16 %v60
    %v155 = vunpack.c.h.b16 %v60
    %v156 = vunpack.c.l.b16 %v61
    %v157 = vunpack.c.h.b16 %v61
    %v158 = vpack.c.b16 %v98, %v94
    %v159 = vpack.c.b16 %v99, %v95
    %v160 = vpack.c.b16 %v100, %v96
    %v161 = vpack.c.b16 %v101, %v97
    %v162 = vpack.c.b16 %v106, %v102
    %v163 = vpack.c.b16 %v107, %v103
    %v164 = vpack.c.b16 %v108, %v104
    %v165 = vpack.c.b16 %v109, %v105
    %v166 = vpack.c.b16 %v114, %v110
    %v167 = vpack.c.b16 %v115, %v111
    %v168 = vpack.c.b16 %v116, %v112
    %v169 = vpack.c.b16 %v117, %v113
    %v170 = vpack.c.b16 %v122, %v118
    %v171 = vpack.c.b16 %v123, %v119
    %v172 = vpack.c.b16 %v124, %v120
    %v173 = vpack.c.b16 %v125, %v121
    %v174 = vpack.c.b16 %v130, %v126
    %v175 = vpack.c.b16 %v131, %v127
    %v176 = vpack.c.b16 %v132, %v128
    %v177 = vpack.c.b16 %v133, %v129
    %v178 = vpack.c.b16 %v138, %v134
    %v179 = vpack.c.b16 %v139, %v135
    %v180 = vpack.c.b16 %v140, %v136
    %v181 = vpack.c.b16 %v141, %v137
    %v182 = vpack.c.b16 %v146, %v142
    %v183 = vpack.c.b16 %v147, %v143
    %v184 = vpack.c.b16 %v148, %v144
    %v185 = vpack.c.b16 %v149, %v145
    %v186 = vpack.c.b16 %v154, %v150
    %v187 = vpack.c.b16 %v155, %v151
    %v188 = vpack.c.b16 %v156, %v152
    %v189 = vpack.c.b16 %v157, %v153
    %222 = vmatprep.subr.bf16.mxu0 %v159
    %223 = vmatpush1.bf16.msra.mxu0 %v158
    %224 = vmatprep.subr.bf16.mxu0 %v163
    %225 = vmatpush1.bf16.msra.mxu0 %v162
    %226 = vmatprep.subr.bf16.mxu0 %v167
    %227 = vmatpush1.bf16.msra.mxu0 %v166
    %228 = vmatprep.subr.bf16.mxu0 %v171
    %229 = vmatpush1.bf16.msra.mxu0 %v170
    %230 = vmatprep.subr.bf16.mxu0 %v175
    %231 = vmatpush1.bf16.msra.mxu0 %v174
    %232 = vmatprep.subr.bf16.mxu0 %v179
    %233 = vmatpush1.bf16.msra.mxu0 %v178
    %234 = vmatprep.subr.bf16.mxu0 %v183
    %235 = vmatpush1.bf16.msra.mxu0 %v182
    %236 = vmatprep.subr.bf16.mxu0 %v187
    %237 = vmatpush1.bf16.msra.mxu0 %v186
    %238 = vmatprep.subr.bf16.mxu0 0
    %239 = vmatpush1.bf16.msra.mxu0 0
    %240 = vmatprep.subr.bf16.mxu0 0
    %241 = vmatpush1.bf16.msra.mxu0 0
    %242 = vmatprep.subr.bf16.mxu0 0
    %243 = vmatpush1.bf16.msra.mxu0 0
    %244 = vmatprep.subr.bf16.mxu0 0
    %245 = vmatpush1.bf16.msra.mxu0 0
    %246 = vmatprep.subr.bf16.mxu0 0
    %247 = vmatpush1.bf16.msra.mxu0 0
    %248 = vmatprep.subr.bf16.mxu0 0
    %249 = vmatpush1.bf16.msra.mxu0 0
    %250 = vmatprep.subr.bf16.mxu0 0
    %251 = vmatpush1.bf16.msra.mxu0 0
    %252 = vmatprep.subr.bf16.mxu0 0
    %253 = vmatpush1.bf16.msra.mxu0 0
    %254 = vmatprep.mubr.bf16.mxu0 0
    %255 = vmatmul.mubr.bf16.gmra.mrb[0].mxu0 %v29
    %v256 = vpop.f32.mrb[0].mxu0
    %v257 = vadd.f32 0.0, %v256
    %v258 = vpop.f32.mrb[0].mxu0
    %v259 = vadd.f32 0.0, %v258
    %v260 = vpop.f32.mrb[0].mxu0
    %v261 = vpop.f32.mrb[0].mxu0
    %262 = vdwg.mxu0
    %263 = vmatprep.subr.bf16.mxu0 %v161
    %264 = vmatpush1.bf16.msra.mxu0 %v160
    %265 = vmatprep.subr.bf16.mxu0 %v165
    %266 = vmatpush1.bf16.msra.mxu0 %v164
    %267 = vmatprep.subr.bf16.mxu0 %v169
    %268 = vmatpush1.bf16.msra.mxu0 %v168
    %269 = vmatprep.subr.bf16.mxu0 %v173
    %270 = vmatpush1.bf16.msra.mxu0 %v172
    %271 = vmatprep.subr.bf16.mxu0 %v177
    %272 = vmatpush1.bf16.msra.mxu0 %v176
    %273 = vmatprep.subr.bf16.mxu0 %v181
    %274 = vmatpush1.bf16.msra.mxu0 %v180
    %275 = vmatprep.subr.bf16.mxu0 %v185
    %276 = vmatpush1.bf16.msra.mxu0 %v184
    %277 = vmatprep.subr.bf16.mxu0 %v189
    %278 = vmatpush1.bf16.msra.mxu0 %v188
    %279 = vmatprep.subr.bf16.mxu0 0
    %280 = vmatpush1.bf16.msra.mxu0 0
    %281 = vmatprep.subr.bf16.mxu0 0
    %282 = vmatpush1.bf16.msra.mxu0 0
    %283 = vmatprep.subr.bf16.mxu0 0
    %284 = vmatpush1.bf16.msra.mxu0 0
    %285 = vmatprep.subr.bf16.mxu0 0
    %286 = vmatpush1.bf16.msra.mxu0 0
    %287 = vmatprep.subr.bf16.mxu0 0
    %288 = vmatpush1.bf16.msra.mxu0 0
    %289 = vmatprep.subr.bf16.mxu0 0
    %290 = vmatpush1.bf16.msra.mxu0 0
    %291 = vmatprep.subr.bf16.mxu0 0
    %292 = vmatpush1.bf16.msra.mxu0 0
    %293 = vmatprep.subr.bf16.mxu0 0
    %294 = vmatpush1.bf16.msra.mxu0 0
    %295 = vmatprep.mubr.bf16.mxu0 0
    %296 = vmatmul.mubr.bf16.gmra.mrb[0].mxu0 %v29
    %v297 = vpop.f32.mrb[0].mxu0
    %v298 = vadd.f32 0.0, %v297
    %v299 = vpop.f32.mrb[0].mxu0
    %v300 = vadd.f32 0.0, %v299
    %v301 = vpop.f32.mrb[0].mxu0
    %v302 = vpop.f32.mrb[0].mxu0
    %303 = vdwg.mxu0
    %v308 = vcombine.low %v257, %v259
    %v309 = vcombine.low %v298, %v300
    %v311 = vunpack.c.l.s4 1983009808
    %v312 = vunpack.c.0.s8 %v311
    %v313 = vlaneseq
    %v314 = vshrl.u32 %v313, 7
    %v315 = vsub.s32 %v312, %v314
    %v316 = vrot.slane %v308, %v315
    %v318 = vunpack.c.l.s4 1983009808
    %v319 = vunpack.c.0.s8 %v318
    %v320 = vlaneseq
    %v321 = vshrl.u32 %v320, 7
    %v322 = vsub.s32 %v319, %v321
    %v323 = vrot.slane %v309, %v322
    %v324 = vcombine.low %v316, %v323
    %v326 = vadd.f32 %v28, %v324
    %v327 = vxor.u32 %v326, 2147483648
    %v328 = vmul.f32 %v327, 1.442695
    %v329 = vpow.pop %v328
    %v330 = vadd.f32 %v329, 1.0
    %v331 = vrcp.pop %v330
    %v332 = vmul.f32 1.0, %v331
    %v334 = vrot.slane %v326, 6
    %v336 = vtanh.pop %v334
    %v338 = vrot.slane %v332, 2
    %v340 = vmul.f32 %v338, %v26
    %v341 = vmul.f32 %v332, %v336
    %v342 = vadd.f32 %v340, %v341
    %v343 = vtanh.pop %v342
    %v344 = vrot.slane %v332, 4
    %v346 = vmul.f32 %v344, %v343
    %s347 = scalar_lea.vmem %s0, 4
    %v348 = vld [vmem:[%s347] sm:$0xf]
    %v349 = vunpack.c.l.bf16 %v348
    %v350 = vpack.c.bf16 %v346, %v346
    %351 = vmatprep.subr.bf16.mxu0 %v159
    %352 = vmatpush1.bf16.msra.mxu0 %v158
    %353 = vmatprep.subr.bf16.mxu0 %v163
    %354 = vmatpush1.bf16.msra.mxu0 %v162
    %355 = vmatprep.subr.bf16.mxu0 %v167
    %356 = vmatpush1.bf16.msra.mxu0 %v166
    %357 = vmatprep.subr.bf16.mxu0 %v171
    %358 = vmatpush1.bf16.msra.mxu0 %v170
    %359 = vmatprep.subr.bf16.mxu0 %v175
    %360 = vmatpush1.bf16.msra.mxu0 %v174
    %361 = vmatprep.subr.bf16.mxu0 %v179
    %362 = vmatpush1.bf16.msra.mxu0 %v178
    %363 = vmatprep.subr.bf16.mxu0 %v183
    %364 = vmatpush1.bf16.msra.mxu0 %v182
    %365 = vmatprep.subr.bf16.mxu0 %v187
    %366 = vmatpush1.bf16.msra.mxu0 %v186
    %367 = vmatprep.subr.bf16.mxu0 0
    %368 = vmatpush1.bf16.msra.mxu0 0
    %369 = vmatprep.subr.bf16.mxu0 0
    %370 = vmatpush1.bf16.msra.mxu0 0
    %371 = vmatprep.subr.bf16.mxu0 0
    %372 = vmatpush1.bf16.msra.mxu0 0
    %373 = vmatprep.subr.bf16.mxu0 0
    %374 = vmatpush1.bf16.msra.mxu0 0
    %375 = vmatprep.subr.bf16.mxu0 0
    %376 = vmatpush1.bf16.msra.mxu0 0
    %377 = vmatprep.subr.bf16.mxu0 0
    %378 = vmatpush1.bf16.msra.mxu0 0
    %379 = vmatprep.subr.bf16.mxu0 0
    %380 = vmatpush1.bf16.msra.mxu0 0
    %381 = vmatprep.subr.bf16.mxu0 0
    %382 = vmatpush1.bf16.msra.mxu0 0
    %383 = vmatprep.mubr.bf16.mxu0 0
    %384 = vmatmul.mubr.bf16.gmra.mrb[0].mxu0 %v350
    %v385 = vpop.f32.mrb[0].mxu0
    %v386 = vadd.f32 0.0, %v385
    %v387 = vpop.f32.mrb[0].mxu0
    %v388 = vadd.f32 0.0, %v387
    %v389 = vpop.f32.mrb[0].mxu0
    %v390 = vpop.f32.mrb[0].mxu0
    %391 = vdwg.mxu0
    %392 = vmatprep.subr.bf16.mxu0 %v161
    %393 = vmatpush1.bf16.msra.mxu0 %v160
    %394 = vmatprep.subr.bf16.mxu0 %v165
    %395 = vmatpush1.bf16.msra.mxu0 %v164
    %396 = vmatprep.subr.bf16.mxu0 %v169
    %397 = vmatpush1.bf16.msra.mxu0 %v168
    %398 = vmatprep.subr.bf16.mxu0 %v173
    %399 = vmatpush1.bf16.msra.mxu0 %v172
    %400 = vmatprep.subr.bf16.mxu0 %v177
    %401 = vmatpush1.bf16.msra.mxu0 %v176
    %402 = vmatprep.subr.bf16.mxu0 %v181
    %403 = vmatpush1.bf16.msra.mxu0 %v180
    %404 = vmatprep.subr.bf16.mxu0 %v185
    %405 = vmatpush1.bf16.msra.mxu0 %v184
    %406 = vmatprep.subr.bf16.mxu0 %v189
    %407 = vmatpush1.bf16.msra.mxu0 %v188
    %408 = vmatprep.subr.bf16.mxu0 0
    %409 = vmatpush1.bf16.msra.mxu0 0
    %410 = vmatprep.subr.bf16.mxu0 0
    %411 = vmatpush1.bf16.msra.mxu0 0
    %412 = vmatprep.subr.bf16.mxu0 0
    %413 = vmatpush1.bf16.msra.mxu0 0
    %414 = vmatprep.subr.bf16.mxu0 0
    %415 = vmatpush1.bf16.msra.mxu0 0
    %416 = vmatprep.subr.bf16.mxu0 0
    %417 = vmatpush1.bf16.msra.mxu0 0
    %418 = vmatprep.subr.bf16.mxu0 0
    %419 = vmatpush1.bf16.msra.mxu0 0
    %420 = vmatprep.subr.bf16.mxu0 0
    %421 = vmatpush1.bf16.msra.mxu0 0
    %422 = vmatprep.subr.bf16.mxu0 0
    %423 = vmatpush1.bf16.msra.mxu0 0
    %424 = vmatprep.mubr.bf16.mxu0 0
    %425 = vmatmul.mubr.bf16.gmra.mrb[0].mxu0 %v350
    %v426 = vpop.f32.mrb[0].mxu0
    %v427 = vadd.f32 0.0, %v426
    %v428 = vpop.f32.mrb[0].mxu0
    %v429 = vadd.f32 0.0, %v428
    %v430 = vpop.f32.mrb[0].mxu0
    %v431 = vpop.f32.mrb[0].mxu0
    %432 = vdwg.mxu0
    %v437 = vcombine.low %v386, %v388
    %v438 = vcombine.low %v427, %v429
    %v440 = vunpack.c.l.s4 1983009808
    %v441 = vunpack.c.0.s8 %v440
    %v442 = vlaneseq
    %v443 = vshrl.u32 %v442, 7
    %v444 = vsub.s32 %v441, %v443
    %v445 = vrot.slane %v437, %v444
    %v447 = vunpack.c.l.s4 1983009808
    %v448 = vunpack.c.0.s8 %v447
    %v449 = vlaneseq
    %v450 = vshrl.u32 %v449, 7
    %v451 = vsub.s32 %v448, %v450
    %v452 = vrot.slane %v438, %v451
    %v453 = vcombine.low %v445, %v452
    %v455 = vadd.f32 %v349, %v453
    %v456 = vxor.u32 %v455, 2147483648
    %v457 = vmul.f32 %v456, 1.442695
    %v458 = vpow.pop %v457
    %v459 = vadd.f32 %v458, 1.0
    %v460 = vrcp.pop %v459
    %v461 = vmul.f32 1.0, %v460
    %v463 = vrot.slane %v455, 6
    %v465 = vtanh.pop %v463
    %v467 = vrot.slane %v461, 2
    %v469 = vmul.f32 %v467, %v342
    %v470 = vmul.f32 %v461, %v465
    %v471 = vadd.f32 %v469, %v470
    %v472 = vtanh.pop %v471
    %v473 = vrot.slane %v461, 4
    %v475 = vmul.f32 %v473, %v472
    %s476 = scalar_lea.vmem %s0, 8
    %v477 = vld [vmem:[%s476] sm:$0xf]
    %v478 = vunpack.c.l.bf16 %v477
    %v479 = vpack.c.bf16 %v475, %v475
    %480 = vmatprep.subr.bf16.mxu0 %v159
    %481 = vmatpush1.bf16.msra.mxu0 %v158
    %482 = vmatprep.subr.bf16.mxu0 %v163
    %483 = vmatpush1.bf16.msra.mxu0 %v162
    %484 = vmatprep.subr.bf16.mxu0 %v167
    %485 = vmatpush1.bf16.msra.mxu0 %v166
    %486 = vmatprep.subr.bf16.mxu0 %v171
    %487 = vmatpush1.bf16.msra.mxu0 %v170
    %488 = vmatprep.subr.bf16.mxu0 %v175
    %489 = vmatpush1.bf16.msra.mxu0 %v174
    %490 = vmatprep.subr.bf16.mxu0 %v179
    %491 = vmatpush1.bf16.msra.mxu0 %v178
    %492 = vmatprep.subr.bf16.mxu0 %v183
    %493 = vmatpush1.bf16.msra.mxu0 %v182
    %494 = vmatprep.subr.bf16.mxu0 %v187
    %495 = vmatpush1.bf16.msra.mxu0 %v186
    %496 = vmatprep.subr.bf16.mxu0 0
    %497 = vmatpush1.bf16.msra.mxu0 0
    %498 = vmatprep.subr.bf16.mxu0 0
    %499 = vmatpush1.bf16.msra.mxu0 0
    %500 = vmatprep.subr.bf16.mxu0 0
    %501 = vmatpush1.bf16.msra.mxu0 0
    %502 = vmatprep.subr.bf16.mxu0 0
    %503 = vmatpush1.bf16.msra.mxu0 0
    %504 = vmatprep.subr.bf16.mxu0 0
    %505 = vmatpush1.bf16.msra.mxu0 0
    %506 = vmatprep.subr.bf16.mxu0 0
    %507 = vmatpush1.bf16.msra.mxu0 0
    %508 = vmatprep.subr.bf16.mxu0 0
    %509 = vmatpush1.bf16.msra.mxu0 0
    %510 = vmatprep.subr.bf16.mxu0 0
    %511 = vmatpush1.bf16.msra.mxu0 0
    %512 = vmatprep.mubr.bf16.mxu0 0
    %513 = vmatmul.mubr.bf16.gmra.mrb[0].mxu0 %v479
    %v514 = vpop.f32.mrb[0].mxu0
    %v515 = vadd.f32 0.0, %v514
    %v516 = vpop.f32.mrb[0].mxu0
    %v517 = vadd.f32 0.0, %v516
    %v518 = vpop.f32.mrb[0].mxu0
    %v519 = vpop.f32.mrb[0].mxu0
    %520 = vdwg.mxu0
    %521 = vmatprep.subr.bf16.mxu0 %v161
    %522 = vmatpush1.bf16.msra.mxu0 %v160
    %523 = vmatprep.subr.bf16.mxu0 %v165
    %524 = vmatpush1.bf16.msra.mxu0 %v164
    %525 = vmatprep.subr.bf16.mxu0 %v169
    %526 = vmatpush1.bf16.msra.mxu0 %v168
    %527 = vmatprep.subr.bf16.mxu0 %v173
    %528 = vmatpush1.bf16.msra.mxu0 %v172
    %529 = vmatprep.subr.bf16.mxu0 %v177
    %530 = vmatpush1.bf16.msra.mxu0 %v176
    %531 = vmatprep.subr.bf16.mxu0 %v181
    %532 = vmatpush1.bf16.msra.mxu0 %v180
    %533 = vmatprep.subr.bf16.mxu0 %v185
    %534 = vmatpush1.bf16.msra.mxu0 %v184
    %535 = vmatprep.subr.bf16.mxu0 %v189
    %536 = vmatpush1.bf16.msra.mxu0 %v188
    %537 = vmatprep.subr.bf16.mxu0 0
    %538 = vmatpush1.bf16.msra.mxu0 0
    %539 = vmatprep.subr.bf16.mxu0 0
    %540 = vmatpush1.bf16.msra.mxu0 0
    %541 = vmatprep.subr.bf16.mxu0 0
    %542 = vmatpush1.bf16.msra.mxu0 0
    %543 = vmatprep.subr.bf16.mxu0 0
    %544 = vmatpush1.bf16.msra.mxu0 0
    %545 = vmatprep.subr.bf16.mxu0 0
    %546 = vmatpush1.bf16.msra.mxu0 0
    %547 = vmatprep.subr.bf16.mxu0 0
    %548 = vmatpush1.bf16.msra.mxu0 0
    %549 = vmatprep.subr.bf16.mxu0 0
    %550 = vmatpush1.bf16.msra.mxu0 0
    %551 = vmatprep.subr.bf16.mxu0 0
    %552 = vmatpush1.bf16.msra.mxu0 0
    %553 = vmatprep.mubr.bf16.mxu0 0
    %554 = vmatmul.mubr.bf16.gmra.mrb[0].mxu0 %v479
    %v555 = vpop.f32.mrb[0].mxu0
    %v556 = vadd.f32 0.0, %v555
    %v557 = vpop.f32.mrb[0].mxu0
    %v558 = vadd.f32 0.0, %v557
    %v559 = vpop.f32.mrb[0].mxu0
    %v560 = vpop.f32.mrb[0].mxu0
    %561 = vdwg.mxu0
    %v566 = vcombine.low %v515, %v517
    %v567 = vcombine.low %v556, %v558
    %v569 = vunpack.c.l.s4 1983009808
    %v570 = vunpack.c.0.s8 %v569
    %v571 = vlaneseq
    %v572 = vshrl.u32 %v571, 7
    %v573 = vsub.s32 %v570, %v572
    %v574 = vrot.slane %v566, %v573
    %v576 = vunpack.c.l.s4 1983009808
    %v577 = vunpack.c.0.s8 %v576
    %v578 = vlaneseq
    %v579 = vshrl.u32 %v578, 7
    %v580 = vsub.s32 %v577, %v579
    %v581 = vrot.slane %v567, %v580
    %v582 = vcombine.low %v574, %v581
    %v584 = vadd.f32 %v478, %v582
    %v585 = vxor.u32 %v584, 2147483648
    %v586 = vmul.f32 %v585, 1.442695
    %v587 = vpow.pop %v586
    %v588 = vadd.f32 %v587, 1.0
    %v589 = vrcp.pop %v588
    %v590 = vmul.f32 1.0, %v589
    %v592 = vrot.slane %v584, 6
    %v594 = vtanh.pop %v592
    %v596 = vrot.slane %v590, 2
    %v598 = vmul.f32 %v596, %v471
    %v599 = vmul.f32 %v590, %v594
    %v600 = vadd.f32 %v598, %v599
    %v601 = vtanh.pop %v600
    %v602 = vrot.slane %v590, 4
    %v604 = vmul.f32 %v602, %v601
    %s605 = scalar_lea.vmem %s0, 12
    %v606 = vld [vmem:[%s605] sm:$0xf]
    %v607 = vunpack.c.l.bf16 %v606
    %v608 = vpack.c.bf16 %v604, %v604
    %609 = vmatprep.subr.bf16.mxu0 %v159
    %610 = vmatpush1.bf16.msra.mxu0 %v158
    %611 = vmatprep.subr.bf16.mxu0 %v163
    %612 = vmatpush1.bf16.msra.mxu0 %v162
    %613 = vmatprep.subr.bf16.mxu0 %v167
    %614 = vmatpush1.bf16.msra.mxu0 %v166
    %615 = vmatprep.subr.bf16.mxu0 %v171
    %616 = vmatpush1.bf16.msra.mxu0 %v170
    %617 = vmatprep.subr.bf16.mxu0 %v175
    %618 = vmatpush1.bf16.msra.mxu0 %v174
    %619 = vmatprep.subr.bf16.mxu0 %v179
    %620 = vmatpush1.bf16.msra.mxu0 %v178
    %621 = vmatprep.subr.bf16.mxu0 %v183
    %622 = vmatpush1.bf16.msra.mxu0 %v182
    %623 = vmatprep.subr.bf16.mxu0 %v187
    %624 = vmatpush1.bf16.msra.mxu0 %v186
    %625 = vmatprep.subr.bf16.mxu0 0
    %626 = vmatpush1.bf16.msra.mxu0 0
    %627 = vmatprep.subr.bf16.mxu0 0
    %628 = vmatpush1.bf16.msra.mxu0 0
    %629 = vmatprep.subr.bf16.mxu0 0
    %630 = vmatpush1.bf16.msra.mxu0 0
    %631 = vmatprep.subr.bf16.mxu0 0
    %632 = vmatpush1.bf16.msra.mxu0 0
    %633 = vmatprep.subr.bf16.mxu0 0
    %634 = vmatpush1.bf16.msra.mxu0 0
    %635 = vmatprep.subr.bf16.mxu0 0
    %636 = vmatpush1.bf16.msra.mxu0 0
    %637 = vmatprep.subr.bf16.mxu0 0
    %638 = vmatpush1.bf16.msra.mxu0 0
    %639 = vmatprep.subr.bf16.mxu0 0
    %640 = vmatpush1.bf16.msra.mxu0 0
    %641 = vmatprep.mubr.bf16.mxu0 0
    %642 = vmatmul.mubr.bf16.gmra.mrb[0].mxu0 %v608
    %v643 = vpop.f32.mrb[0].mxu0
    %v644 = vadd.f32 0.0, %v643
    %v645 = vpop.f32.mrb[0].mxu0
    %v646 = vadd.f32 0.0, %v645
    %v647 = vpop.f32.mrb[0].mxu0
    %v648 = vpop.f32.mrb[0].mxu0
    %649 = vdwg.mxu0
    %650 = vmatprep.subr.bf16.mxu0 %v161
    %651 = vmatpush1.bf16.msra.mxu0 %v160
    %652 = vmatprep.subr.bf16.mxu0 %v165
    %653 = vmatpush1.bf16.msra.mxu0 %v164
    %654 = vmatprep.subr.bf16.mxu0 %v169
    %655 = vmatpush1.bf16.msra.mxu0 %v168
    %656 = vmatprep.subr.bf16.mxu0 %v173
    %657 = vmatpush1.bf16.msra.mxu0 %v172
    %658 = vmatprep.subr.bf16.mxu0 %v177
    %659 = vmatpush1.bf16.msra.mxu0 %v176
    %660 = vmatprep.subr.bf16.mxu0 %v181
    %661 = vmatpush1.bf16.msra.mxu0 %v180
    %662 = vmatprep.subr.bf16.mxu0 %v185
    %663 = vmatpush1.bf16.msra.mxu0 %v184
    %664 = vmatprep.subr.bf16.mxu0 %v189
    %665 = vmatpush1.bf16.msra.mxu0 %v188
    %666 = vmatprep.subr.bf16.mxu0 0
    %667 = vmatpush1.bf16.msra.mxu0 0
    %668 = vmatprep.subr.bf16.mxu0 0
    %669 = vmatpush1.bf16.msra.mxu0 0
    %670 = vmatprep.subr.bf16.mxu0 0
    %671 = vmatpush1.bf16.msra.mxu0 0
    %672 = vmatprep.subr.bf16.mxu0 0
    %673 = vmatpush1.bf16.msra.mxu0 0
    %674 = vmatprep.subr.bf16.mxu0 0
    %675 = vmatpush1.bf16.msra.mxu0 0
    %676 = vmatprep.subr.bf16.mxu0 0
    %677 = vmatpush1.bf16.msra.mxu0 0
    %678 = vmatprep.subr.bf16.mxu0 0
    %679 = vmatpush1.bf16.msra.mxu0 0
    %680 = vmatprep.subr.bf16.mxu0 0
    %681 = vmatpush1.bf16.msra.mxu0 0
    %682 = vmatprep.mubr.bf16.mxu0 0
    %683 = vmatmul.mubr.bf16.gmra.mrb[0].mxu0 %v608
    %v684 = vpop.f32.mrb[0].mxu0
    %v685 = vadd.f32 0.0, %v684
    %v686 = vpop.f32.mrb[0].mxu0
    %v687 = vadd.f32 0.0, %v686
    %v688 = vpop.f32.mrb[0].mxu0
    %v689 = vpop.f32.mrb[0].mxu0
    %690 = vdwg.mxu0
    %v695 = vcombine.low %v644, %v646
    %v696 = vcombine.low %v685, %v687
    %v698 = vunpack.c.l.s4 1983009808
    %v699 = vunpack.c.0.s8 %v698
    %v700 = vlaneseq
    %v701 = vshrl.u32 %v700, 7
    %v702 = vsub.s32 %v699, %v701
    %v703 = vrot.slane %v695, %v702
    %v705 = vunpack.c.l.s4 1983009808
    %v706 = vunpack.c.0.s8 %v705
    %v707 = vlaneseq
    %v708 = vshrl.u32 %v707, 7
    %v709 = vsub.s32 %v706, %v708
    %v710 = vrot.slane %v696, %v709
    %v711 = vcombine.low %v703, %v710
    %v713 = vadd.f32 %v607, %v711
    %v714 = vxor.u32 %v713, 2147483648
    %v715 = vmul.f32 %v714, 1.442695
    %v716 = vpow.pop %v715
    %v717 = vadd.f32 %v716, 1.0
    %v718 = vrcp.pop %v717
    %v719 = vmul.f32 1.0, %v718
    %v721 = vrot.slane %v713, 6
    %v723 = vtanh.pop %v721
    %v725 = vrot.slane %v719, 2
    %v727 = vmul.f32 %v725, %v600
    %v728 = vmul.f32 %v719, %v723
    %v729 = vadd.f32 %v727, %v728
    %v730 = vtanh.pop %v729
    %v731 = vrot.slane %v719, 4
    %v733 = vmul.f32 %v731, %v730
    %s734 = scalar_lea.vmem %s0, 16
    %v735 = vld [vmem:[%s734] sm:$0xf]
    %v736 = vunpack.c.l.bf16 %v735
    %v737 = vpack.c.bf16 %v733, %v733
    %738 = vmatprep.subr.bf16.mxu0 %v159
    %739 = vmatpush1.bf16.msra.mxu0 %v158
    %740 = vmatprep.subr.bf16.mxu0 %v163
    %741 = vmatpush1.bf16.msra.mxu0 %v162
    %742 = vmatprep.subr.bf16.mxu0 %v167
    %743 = vmatpush1.bf16.msra.mxu0 %v166
    %744 = vmatprep.subr.bf16.mxu0 %v171
    %745 = vmatpush1.bf16.msra.mxu0 %v170
    %746 = vmatprep.subr.bf16.mxu0 %v175
    %747 = vmatpush1.bf16.msra.mxu0 %v174
    %748 = vmatprep.subr.bf16.mxu0 %v179
    %749 = vmatpush1.bf16.msra.mxu0 %v178
    %750 = vmatprep.subr.bf16.mxu0 %v183
    %751 = vmatpush1.bf16.msra.mxu0 %v182
    %752 = vmatprep.subr.bf16.mxu0 %v187
    %753 = vmatpush1.bf16.msra.mxu0 %v186
    %754 = vmatprep.subr.bf16.mxu0 0
    %755 = vmatpush1.bf16.msra.mxu0 0
    %756 = vmatprep.subr.bf16.mxu0 0
    %757 = vmatpush1.bf16.msra.mxu0 0
    %758 = vmatprep.subr.bf16.mxu0 0
    %759 = vmatpush1.bf16.msra.mxu0 0
    %760 = vmatprep.subr.bf16.mxu0 0
    %761 = vmatpush1.bf16.msra.mxu0 0
    %762 = vmatprep.subr.bf16.mxu0 0
    %763 = vmatpush1.bf16.msra.mxu0 0
    %764 = vmatprep.subr.bf16.mxu0 0
    %765 = vmatpush1.bf16.msra.mxu0 0
    %766 = vmatprep.subr.bf16.mxu0 0
    %767 = vmatpush1.bf16.msra.mxu0 0
    %768 = vmatprep.subr.bf16.mxu0 0
    %769 = vmatpush1.bf16.msra.mxu0 0
    %770 = vmatprep.mubr.bf16.mxu0 0
    %771 = vmatmul.mubr.bf16.gmra.mrb[0].mxu0 %v737
    %v772 = vpop.f32.mrb[0].mxu0
    %v773 = vadd.f32 0.0, %v772
    %v774 = vpop.f32.mrb[0].mxu0
    %v775 = vadd.f32 0.0, %v774
    %v776 = vpop.f32.mrb[0].mxu0
    %v777 = vpop.f32.mrb[0].mxu0
    %778 = vdwg.mxu0
    %779 = vmatprep.subr.bf16.mxu0 %v161
    %780 = vmatpush1.bf16.msra.mxu0 %v160
    %781 = vmatprep.subr.bf16.mxu0 %v165
    %782 = vmatpush1.bf16.msra.mxu0 %v164
    %783 = vmatprep.subr.bf16.mxu0 %v169
    %784 = vmatpush1.bf16.msra.mxu0 %v168
    %785 = vmatprep.subr.bf16.mxu0 %v173
    %786 = vmatpush1.bf16.msra.mxu0 %v172
    %787 = vmatprep.subr.bf16.mxu0 %v177
    %788 = vmatpush1.bf16.msra.mxu0 %v176
    %789 = vmatprep.subr.bf16.mxu0 %v181
    %790 = vmatpush1.bf16.msra.mxu0 %v180
    %791 = vmatprep.subr.bf16.mxu0 %v185
    %792 = vmatpush1.bf16.msra.mxu0 %v184
    %793 = vmatprep.subr.bf16.mxu0 %v189
    %794 = vmatpush1.bf16.msra.mxu0 %v188
    %795 = vmatprep.subr.bf16.mxu0 0
    %796 = vmatpush1.bf16.msra.mxu0 0
    %797 = vmatprep.subr.bf16.mxu0 0
    %798 = vmatpush1.bf16.msra.mxu0 0
    %799 = vmatprep.subr.bf16.mxu0 0
    %800 = vmatpush1.bf16.msra.mxu0 0
    %801 = vmatprep.subr.bf16.mxu0 0
    %802 = vmatpush1.bf16.msra.mxu0 0
    %803 = vmatprep.subr.bf16.mxu0 0
    %804 = vmatpush1.bf16.msra.mxu0 0
    %805 = vmatprep.subr.bf16.mxu0 0
    %806 = vmatpush1.bf16.msra.mxu0 0
    %807 = vmatprep.subr.bf16.mxu0 0
    %808 = vmatpush1.bf16.msra.mxu0 0
    %809 = vmatprep.subr.bf16.mxu0 0
    %810 = vmatpush1.bf16.msra.mxu0 0
    %811 = vmatprep.mubr.bf16.mxu0 0
    %812 = vmatmul.mubr.bf16.gmra.mrb[0].mxu0 %v737
    %v813 = vpop.f32.mrb[0].mxu0
    %v814 = vadd.f32 0.0, %v813
    %v815 = vpop.f32.mrb[0].mxu0
    %v816 = vadd.f32 0.0, %v815
    %v817 = vpop.f32.mrb[0].mxu0
    %v818 = vpop.f32.mrb[0].mxu0
    %819 = vdwg.mxu0
    %v824 = vcombine.low %v773, %v775
    %v825 = vcombine.low %v814, %v816
    %v827 = vunpack.c.l.s4 1983009808
    %v828 = vunpack.c.0.s8 %v827
    %v829 = vlaneseq
    %v830 = vshrl.u32 %v829, 7
    %v831 = vsub.s32 %v828, %v830
    %v832 = vrot.slane %v824, %v831
    %v834 = vunpack.c.l.s4 1983009808
    %v835 = vunpack.c.0.s8 %v834
    %v836 = vlaneseq
    %v837 = vshrl.u32 %v836, 7
    %v838 = vsub.s32 %v835, %v837
    %v839 = vrot.slane %v825, %v838
    %v840 = vcombine.low %v832, %v839
    %v842 = vadd.f32 %v736, %v840
    %v843 = vxor.u32 %v842, 2147483648
    %v844 = vmul.f32 %v843, 1.442695
    %v845 = vpow.pop %v844
    %v846 = vadd.f32 %v845, 1.0
    %v847 = vrcp.pop %v846
    %v848 = vmul.f32 1.0, %v847
    %v850 = vrot.slane %v842, 6
    %v852 = vtanh.pop %v850
    %v854 = vrot.slane %v848, 2
    %v856 = vmul.f32 %v854, %v729
    %v857 = vmul.f32 %v848, %v852
    %v858 = vadd.f32 %v856, %v857
    %v859 = vtanh.pop %v858
    %v860 = vrot.slane %v848, 4
    %v862 = vmul.f32 %v860, %v859
    %s863 = scalar_lea.vmem %s0, 20
    %v864 = vld [vmem:[%s863] sm:$0xf]
    %v865 = vunpack.c.l.bf16 %v864
    %v866 = vpack.c.bf16 %v862, %v862
    %867 = vmatprep.subr.bf16.mxu0 %v159
    %868 = vmatpush1.bf16.msra.mxu0 %v158
    %869 = vmatprep.subr.bf16.mxu0 %v163
    %870 = vmatpush1.bf16.msra.mxu0 %v162
    %871 = vmatprep.subr.bf16.mxu0 %v167
    %872 = vmatpush1.bf16.msra.mxu0 %v166
    %873 = vmatprep.subr.bf16.mxu0 %v171
    %874 = vmatpush1.bf16.msra.mxu0 %v170
    %875 = vmatprep.subr.bf16.mxu0 %v175
    %876 = vmatpush1.bf16.msra.mxu0 %v174
    %877 = vmatprep.subr.bf16.mxu0 %v179
    %878 = vmatpush1.bf16.msra.mxu0 %v178
    %879 = vmatprep.subr.bf16.mxu0 %v183
    %880 = vmatpush1.bf16.msra.mxu0 %v182
    %881 = vmatprep.subr.bf16.mxu0 %v187
    %882 = vmatpush1.bf16.msra.mxu0 %v186
    %883 = vmatprep.subr.bf16.mxu0 0
    %884 = vmatpush1.bf16.msra.mxu0 0
    %885 = vmatprep.subr.bf16.mxu0 0
    %886 = vmatpush1.bf16.msra.mxu0 0
    %887 = vmatprep.subr.bf16.mxu0 0
    %888 = vmatpush1.bf16.msra.mxu0 0
    %889 = vmatprep.subr.bf16.mxu0 0
    %890 = vmatpush1.bf16.msra.mxu0 0
    %891 = vmatprep.subr.bf16.mxu0 0
    %892 = vmatpush1.bf16.msra.mxu0 0
    %893 = vmatprep.subr.bf16.mxu0 0
    %894 = vmatpush1.bf16.msra.mxu0 0
    %895 = vmatprep.subr.bf16.mxu0 0
    %896 = vmatpush1.bf16.msra.mxu0 0
    %897 = vmatprep.subr.bf16.mxu0 0
    %898 = vmatpush1.bf16.msra.mxu0 0
    %899 = vmatprep.mubr.bf16.mxu0 0
    %900 = vmatmul.mubr.bf16.gmra.mrb[0].mxu0 %v866
    %v901 = vpop.f32.mrb[0].mxu0
    %v902 = vadd.f32 0.0, %v901
    %v903 = vpop.f32.mrb[0].mxu0
    %v904 = vadd.f32 0.0, %v903
    %v905 = vpop.f32.mrb[0].mxu0
    %v906 = vpop.f32.mrb[0].mxu0
    %907 = vdwg.mxu0
    %908 = vmatprep.subr.bf16.mxu0 %v161
    %909 = vmatpush1.bf16.msra.mxu0 %v160
    %910 = vmatprep.subr.bf16.mxu0 %v165
    %911 = vmatpush1.bf16.msra.mxu0 %v164
    %912 = vmatprep.subr.bf16.mxu0 %v169
    %913 = vmatpush1.bf16.msra.mxu0 %v168
    %914 = vmatprep.subr.bf16.mxu0 %v173
    %915 = vmatpush1.bf16.msra.mxu0 %v172
    %916 = vmatprep.subr.bf16.mxu0 %v177
    %917 = vmatpush1.bf16.msra.mxu0 %v176
    %918 = vmatprep.subr.bf16.mxu0 %v181
    %919 = vmatpush1.bf16.msra.mxu0 %v180
    %920 = vmatprep.subr.bf16.mxu0 %v185
    %921 = vmatpush1.bf16.msra.mxu0 %v184
    %922 = vmatprep.subr.bf16.mxu0 %v189
    %923 = vmatpush1.bf16.msra.mxu0 %v188
    %924 = vmatprep.subr.bf16.mxu0 0
    %925 = vmatpush1.bf16.msra.mxu0 0
    %926 = vmatprep.subr.bf16.mxu0 0
    %927 = vmatpush1.bf16.msra.mxu0 0
    %928 = vmatprep.subr.bf16.mxu0 0
    %929 = vmatpush1.bf16.msra.mxu0 0
    %930 = vmatprep.subr.bf16.mxu0 0
    %931 = vmatpush1.bf16.msra.mxu0 0
    %932 = vmatprep.subr.bf16.mxu0 0
    %933 = vmatpush1.bf16.msra.mxu0 0
    %934 = vmatprep.subr.bf16.mxu0 0
    %935 = vmatpush1.bf16.msra.mxu0 0
    %936 = vmatprep.subr.bf16.mxu0 0
    %937 = vmatpush1.bf16.msra.mxu0 0
    %938 = vmatprep.subr.bf16.mxu0 0
    %939 = vmatpush1.bf16.msra.mxu0 0
    %940 = vmatprep.mubr.bf16.mxu0 0
    %941 = vmatmul.mubr.bf16.gmra.mrb[0].mxu0 %v866
    %v942 = vpop.f32.mrb[0].mxu0
    %v943 = vadd.f32 0.0, %v942
    %v944 = vpop.f32.mrb[0].mxu0
    %v945 = vadd.f32 0.0, %v944
    %v946 = vpop.f32.mrb[0].mxu0
    %v947 = vpop.f32.mrb[0].mxu0
    %948 = vdwg.mxu0
    %v953 = vcombine.low %v902, %v904
    %v954 = vcombine.low %v943, %v945
    %v956 = vunpack.c.l.s4 1983009808
    %v957 = vunpack.c.0.s8 %v956
    %v958 = vlaneseq
    %v959 = vshrl.u32 %v958, 7
    %v960 = vsub.s32 %v957, %v959
    %v961 = vrot.slane %v953, %v960
    %v963 = vunpack.c.l.s4 1983009808
    %v964 = vunpack.c.0.s8 %v963
    %v965 = vlaneseq
    %v966 = vshrl.u32 %v965, 7
    %v967 = vsub.s32 %v964, %v966
    %v968 = vrot.slane %v954, %v967
    %v969 = vcombine.low %v961, %v968
    %v971 = vadd.f32 %v865, %v969
    %v972 = vxor.u32 %v971, 2147483648
    %v973 = vmul.f32 %v972, 1.442695
    %v974 = vpow.pop %v973
    %v975 = vadd.f32 %v974, 1.0
    %v976 = vrcp.pop %v975
    %v977 = vmul.f32 1.0, %v976
    %v979 = vrot.slane %v971, 6
    %v981 = vtanh.pop %v979
    %v983 = vrot.slane %v977, 2
    %v985 = vmul.f32 %v983, %v858
    %v986 = vmul.f32 %v977, %v981
    %v987 = vadd.f32 %v985, %v986
    %v988 = vtanh.pop %v987
    %v989 = vrot.slane %v977, 4
    %v991 = vmul.f32 %v989, %v988
    %s992 = scalar_lea.vmem %s0, 24
    %v993 = vld [vmem:[%s992] sm:$0xf]
    %v994 = vunpack.c.l.bf16 %v993
    %v995 = vpack.c.bf16 %v991, %v991
    %996 = vmatprep.subr.bf16.mxu0 %v159
    %997 = vmatpush1.bf16.msra.mxu0 %v158
    %998 = vmatprep.subr.bf16.mxu0 %v163
    %999 = vmatpush1.bf16.msra.mxu0 %v162
    %1000 = vmatprep.subr.bf16.mxu0 %v167
    %1001 = vmatpush1.bf16.msra.mxu0 %v166
    %1002 = vmatprep.subr.bf16.mxu0 %v171
    %1003 = vmatpush1.bf16.msra.mxu0 %v170
    %1004 = vmatprep.subr.bf16.mxu0 %v175
    %1005 = vmatpush1.bf16.msra.mxu0 %v174
    %1006 = vmatprep.subr.bf16.mxu0 %v179
    %1007 = vmatpush1.bf16.msra.mxu0 %v178
    %1008 = vmatprep.subr.bf16.mxu0 %v183
    %1009 = vmatpush1.bf16.msra.mxu0 %v182
    %1010 = vmatprep.subr.bf16.mxu0 %v187
    %1011 = vmatpush1.bf16.msra.mxu0 %v186
    %1012 = vmatprep.subr.bf16.mxu0 0
    %1013 = vmatpush1.bf16.msra.mxu0 0
    %1014 = vmatprep.subr.bf16.mxu0 0
    %1015 = vmatpush1.bf16.msra.mxu0 0
    %1016 = vmatprep.subr.bf16.mxu0 0
    %1017 = vmatpush1.bf16.msra.mxu0 0
    %1018 = vmatprep.subr.bf16.mxu0 0
    %1019 = vmatpush1.bf16.msra.mxu0 0
    %1020 = vmatprep.subr.bf16.mxu0 0
    %1021 = vmatpush1.bf16.msra.mxu0 0
    %1022 = vmatprep.subr.bf16.mxu0 0
    %1023 = vmatpush1.bf16.msra.mxu0 0
    %1024 = vmatprep.subr.bf16.mxu0 0
    %1025 = vmatpush1.bf16.msra.mxu0 0
    %1026 = vmatprep.subr.bf16.mxu0 0
    %1027 = vmatpush1.bf16.msra.mxu0 0
    %1028 = vmatprep.mubr.bf16.mxu0 0
    %1029 = vmatmul.mubr.bf16.gmra.mrb[0].mxu0 %v995
    %v1030 = vpop.f32.mrb[0].mxu0
    %v1031 = vadd.f32 0.0, %v1030
    %v1032 = vpop.f32.mrb[0].mxu0
    %v1033 = vadd.f32 0.0, %v1032
    %v1034 = vpop.f32.mrb[0].mxu0
    %v1035 = vpop.f32.mrb[0].mxu0
    %1036 = vdwg.mxu0
    %1037 = vmatprep.subr.bf16.mxu0 %v161
    %1038 = vmatpush1.bf16.msra.mxu0 %v160
    %1039 = vmatprep.subr.bf16.mxu0 %v165
    %1040 = vmatpush1.bf16.msra.mxu0 %v164
    %1041 = vmatprep.subr.bf16.mxu0 %v169
    %1042 = vmatpush1.bf16.msra.mxu0 %v168
    %1043 = vmatprep.subr.bf16.mxu0 %v173
    %1044 = vmatpush1.bf16.msra.mxu0 %v172
    %1045 = vmatprep.subr.bf16.mxu0 %v177
    %1046 = vmatpush1.bf16.msra.mxu0 %v176
    %1047 = vmatprep.subr.bf16.mxu0 %v181
    %1048 = vmatpush1.bf16.msra.mxu0 %v180
    %1049 = vmatprep.subr.bf16.mxu0 %v185
    %1050 = vmatpush1.bf16.msra.mxu0 %v184
    %1051 = vmatprep.subr.bf16.mxu0 %v189
    %1052 = vmatpush1.bf16.msra.mxu0 %v188
    %1053 = vmatprep.subr.bf16.mxu0 0
    %1054 = vmatpush1.bf16.msra.mxu0 0
    %1055 = vmatprep.subr.bf16.mxu0 0
    %1056 = vmatpush1.bf16.msra.mxu0 0
    %1057 = vmatprep.subr.bf16.mxu0 0
    %1058 = vmatpush1.bf16.msra.mxu0 0
    %1059 = vmatprep.subr.bf16.mxu0 0
    %1060 = vmatpush1.bf16.msra.mxu0 0
    %1061 = vmatprep.subr.bf16.mxu0 0
    %1062 = vmatpush1.bf16.msra.mxu0 0
    %1063 = vmatprep.subr.bf16.mxu0 0
    %1064 = vmatpush1.bf16.msra.mxu0 0
    %1065 = vmatprep.subr.bf16.mxu0 0
    %1066 = vmatpush1.bf16.msra.mxu0 0
    %1067 = vmatprep.subr.bf16.mxu0 0
    %1068 = vmatpush1.bf16.msra.mxu0 0
    %1069 = vmatprep.mubr.bf16.mxu0 0
    %1070 = vmatmul.mubr.bf16.gmra.mrb[0].mxu0 %v995
    %v1071 = vpop.f32.mrb[0].mxu0
    %v1072 = vadd.f32 0.0, %v1071
    %v1073 = vpop.f32.mrb[0].mxu0
    %v1074 = vadd.f32 0.0, %v1073
    %v1075 = vpop.f32.mrb[0].mxu0
    %v1076 = vpop.f32.mrb[0].mxu0
    %1077 = vdwg.mxu0
    %v1082 = vcombine.low %v1031, %v1033
    %v1083 = vcombine.low %v1072, %v1074
    %v1085 = vunpack.c.l.s4 1983009808
    %v1086 = vunpack.c.0.s8 %v1085
    %v1087 = vlaneseq
    %v1088 = vshrl.u32 %v1087, 7
    %v1089 = vsub.s32 %v1086, %v1088
    %v1090 = vrot.slane %v1082, %v1089
    %v1092 = vunpack.c.l.s4 1983009808
    %v1093 = vunpack.c.0.s8 %v1092
    %v1094 = vlaneseq
    %v1095 = vshrl.u32 %v1094, 7
    %v1096 = vsub.s32 %v1093, %v1095
    %v1097 = vrot.slane %v1083, %v1096
    %v1098 = vcombine.low %v1090, %v1097
    %v1100 = vadd.f32 %v994, %v1098
    %v1101 = vxor.u32 %v1100, 2147483648
    %v1102 = vmul.f32 %v1101, 1.442695
    %v1103 = vpow.pop %v1102
    %v1104 = vadd.f32 %v1103, 1.0
    %v1105 = vrcp.pop %v1104
    %v1106 = vmul.f32 1.0, %v1105
    %v1108 = vrot.slane %v1100, 6
    %v1110 = vtanh.pop %v1108
    %v1112 = vrot.slane %v1106, 2
    %v1114 = vmul.f32 %v1112, %v987
    %v1115 = vmul.f32 %v1106, %v1110
    %v1116 = vadd.f32 %v1114, %v1115
    %v1117 = vtanh.pop %v1116
    %v1118 = vrot.slane %v1106, 4
    %v1120 = vmul.f32 %v1118, %v1117
    %s1121 = scalar_lea.vmem %s0, 28
    %v1122 = vld [vmem:[%s1121] sm:$0xf]
    %v1123 = vunpack.c.l.bf16 %v1122
    %v1124 = vpack.c.bf16 %v1120, %v1120
    %1125 = vmatprep.subr.bf16.mxu0 %v159
    %1126 = vmatpush1.bf16.msra.mxu0 %v158
    %1127 = vmatprep.subr.bf16.mxu0 %v163
    %1128 = vmatpush1.bf16.msra.mxu0 %v162
    %1129 = vmatprep.subr.bf16.mxu0 %v167
    %1130 = vmatpush1.bf16.msra.mxu0 %v166
    %1131 = vmatprep.subr.bf16.mxu0 %v171
    %1132 = vmatpush1.bf16.msra.mxu0 %v170
    %1133 = vmatprep.subr.bf16.mxu0 %v175
    %1134 = vmatpush1.bf16.msra.mxu0 %v174
    %1135 = vmatprep.subr.bf16.mxu0 %v179
    %1136 = vmatpush1.bf16.msra.mxu0 %v178
    %1137 = vmatprep.subr.bf16.mxu0 %v183
    %1138 = vmatpush1.bf16.msra.mxu0 %v182
    %1139 = vmatprep.subr.bf16.mxu0 %v187
    %1140 = vmatpush1.bf16.msra.mxu0 %v186
    %1141 = vmatprep.subr.bf16.mxu0 0
    %1142 = vmatpush1.bf16.msra.mxu0 0
    %1143 = vmatprep.subr.bf16.mxu0 0
    %1144 = vmatpush1.bf16.msra.mxu0 0
    %1145 = vmatprep.subr.bf16.mxu0 0
    %1146 = vmatpush1.bf16.msra.mxu0 0
    %1147 = vmatprep.subr.bf16.mxu0 0
    %1148 = vmatpush1.bf16.msra.mxu0 0
    %1149 = vmatprep.subr.bf16.mxu0 0
    %1150 = vmatpush1.bf16.msra.mxu0 0
    %1151 = vmatprep.subr.bf16.mxu0 0
    %1152 = vmatpush1.bf16.msra.mxu0 0
    %1153 = vmatprep.subr.bf16.mxu0 0
    %1154 = vmatpush1.bf16.msra.mxu0 0
    %1155 = vmatprep.subr.bf16.mxu0 0
    %1156 = vmatpush1.bf16.msra.mxu0 0
    %1157 = vmatprep.mubr.bf16.mxu0 0
    %1158 = vmatmul.mubr.bf16.gmra.mrb[0].mxu0 %v1124
    %v1159 = vpop.f32.mrb[0].mxu0
    %v1160 = vadd.f32 0.0, %v1159
    %v1161 = vpop.f32.mrb[0].mxu0
    %v1162 = vadd.f32 0.0, %v1161
    %v1163 = vpop.f32.mrb[0].mxu0
    %v1164 = vpop.f32.mrb[0].mxu0
    %1165 = vdwg.mxu0
    %1166 = vmatprep.subr.bf16.mxu0 %v161
    %1167 = vmatpush1.bf16.msra.mxu0 %v160
    %1168 = vmatprep.subr.bf16.mxu0 %v165
    %1169 = vmatpush1.bf16.msra.mxu0 %v164
    %1170 = vmatprep.subr.bf16.mxu0 %v169
    %1171 = vmatpush1.bf16.msra.mxu0 %v168
    %1172 = vmatprep.subr.bf16.mxu0 %v173
    %1173 = vmatpush1.bf16.msra.mxu0 %v172
    %1174 = vmatprep.subr.bf16.mxu0 %v177
    %1175 = vmatpush1.bf16.msra.mxu0 %v176
    %1176 = vmatprep.subr.bf16.mxu0 %v181
    %1177 = vmatpush1.bf16.msra.mxu0 %v180
    %1178 = vmatprep.subr.bf16.mxu0 %v185
    %1179 = vmatpush1.bf16.msra.mxu0 %v184
    %1180 = vmatprep.subr.bf16.mxu0 %v189
    %1181 = vmatpush1.bf16.msra.mxu0 %v188
    %1182 = vmatprep.subr.bf16.mxu0 0
    %1183 = vmatpush1.bf16.msra.mxu0 0
    %1184 = vmatprep.subr.bf16.mxu0 0
    %1185 = vmatpush1.bf16.msra.mxu0 0
    %1186 = vmatprep.subr.bf16.mxu0 0
    %1187 = vmatpush1.bf16.msra.mxu0 0
    %1188 = vmatprep.subr.bf16.mxu0 0
    %1189 = vmatpush1.bf16.msra.mxu0 0
    %1190 = vmatprep.subr.bf16.mxu0 0
    %1191 = vmatpush1.bf16.msra.mxu0 0
    %1192 = vmatprep.subr.bf16.mxu0 0
    %1193 = vmatpush1.bf16.msra.mxu0 0
    %1194 = vmatprep.subr.bf16.mxu0 0
    %1195 = vmatpush1.bf16.msra.mxu0 0
    %1196 = vmatprep.subr.bf16.mxu0 0
    %1197 = vmatpush1.bf16.msra.mxu0 0
    %1198 = vmatprep.mubr.bf16.mxu0 0
    %1199 = vmatmul.mubr.bf16.gmra.mrb[0].mxu0 %v1124
    %v1200 = vpop.f32.mrb[0].mxu0
    %v1201 = vadd.f32 0.0, %v1200
    %v1202 = vpop.f32.mrb[0].mxu0
    %v1203 = vadd.f32 0.0, %v1202
    %v1204 = vpop.f32.mrb[0].mxu0
    %v1205 = vpop.f32.mrb[0].mxu0
    %1206 = vdwg.mxu0
    %v1211 = vcombine.low %v1160, %v1162
    %v1212 = vcombine.low %v1201, %v1203
    %v1214 = vunpack.c.l.s4 1983009808
    %v1215 = vunpack.c.0.s8 %v1214
    %v1216 = vlaneseq
    %v1217 = vshrl.u32 %v1216, 7
    %v1218 = vsub.s32 %v1215, %v1217
    %v1219 = vrot.slane %v1211, %v1218
    %v1221 = vunpack.c.l.s4 1983009808
    %v1222 = vunpack.c.0.s8 %v1221
    %v1223 = vlaneseq
    %v1224 = vshrl.u32 %v1223, 7
    %v1225 = vsub.s32 %v1222, %v1224
    %v1226 = vrot.slane %v1212, %v1225
    %v1227 = vcombine.low %v1219, %v1226
    %v1229 = vadd.f32 %v1123, %v1227
    %v1230 = vxor.u32 %v1229, 2147483648
    %v1231 = vmul.f32 %v1230, 1.442695
    %v1232 = vpow.pop %v1231
    %v1233 = vadd.f32 %v1232, 1.0
    %v1234 = vrcp.pop %v1233
    %v1235 = vmul.f32 1.0, %v1234
    %v1237 = vrot.slane %v1229, 6
    %v1239 = vtanh.pop %v1237
    %v1241 = vrot.slane %v1235, 2
    %v1243 = vmul.f32 %v1241, %v1116
    %v1244 = vmul.f32 %v1235, %v1239
    %v1245 = vadd.f32 %v1243, %v1244
    %v1246 = vtanh.pop %v1245
    %v1247 = vrot.slane %v1235, 4
    %v1249 = vmul.f32 %v1247, %v1246
    %1250 = vst [vmem:[#allocation2] sm:$0x3] %v1249
    %1251 = vst [vmem:[#allocation3] sm:$0x3] %v1245
    // Predicated region
    $region22: #{lstm_classifier_forward.3} parent=1 // pred_check
      %p1252 = pneg %p19
    $region23: #{lstm_classifier_forward.3} parent=1 // pred_check_branch
      %1254 = sbr.rel (%p1252) target = $region25
    $region24: #{lstm_classifier_forward.3} parent=1 // pred_region
      %v1255 = vld [vmem:[%s2] sm:$0xff]
      %v1256 = vld [vmem:[%s2 + $0x8] sm:$0xff]
      %v1257 = vld [vmem:[%s2 + $0x10] sm:$0xff]
      %v1258 = vld [vmem:[%s2 + $0x18] sm:$0xff]
      %v1259 = vld [vmem:[%s2 + $0x20] sm:$0xff]
      %v1260 = vld [vmem:[%s2 + $0x28] sm:$0xff]
      %v1261 = vld [vmem:[%s2 + $0x30] sm:$0xff]
      %v1262 = vld [vmem:[%s2 + $0x38] sm:$0xff]
      %v1263 = vld [vmem:[%s2 + $0x40] sm:$0xff]
      %v1264 = vld [vmem:[%s2 + $0x48] sm:$0xff]
      %v1265 = vld [vmem:[%s2 + $0x50] sm:$0xff]
      %v1266 = vld [vmem:[%s2 + $0x58] sm:$0xff]
      %v1267 = vld [vmem:[%s2 + $0x60] sm:$0xff]
      %v1268 = vld [vmem:[%s2 + $0x68] sm:$0xff]
      %v1269 = vld [vmem:[%s2 + $0x70] sm:$0xff]
      %v1270 = vld [vmem:[%s2 + $0x78] sm:$0xff]
      %v1271 = vld [vmem:[%s3] sm:$0x1]
      %v1273 = vlaneseq
      %v1274 = vshrl.u32 %v1273, 7
      %v1275 = vsub.s32 0, %v1274
      %v1276 = vrot.slane %v1271, %v1275
      %1278 = vmatprep.subr.mxu0 0.0
      %1279 = vmatpush1.msra.mxu0 %v1255
      %1280 = vmatprep.subr.mxu0 0.0
      %1281 = vmatpush1.msra.mxu0 %v1256
      %1282 = vmatprep.subr.mxu0 0.0
      %1283 = vmatpush1.msra.mxu0 %v1257
      %1284 = vmatprep.subr.mxu0 0.0
      %1285 = vmatpush1.msra.mxu0 %v1258
      %1286 = vmatprep.subr.mxu0 0.0
      %1287 = vmatpush1.msra.mxu0 %v1259
      %1288 = vmatprep.subr.mxu0 0.0
      %1289 = vmatpush1.msra.mxu0 %v1260
      %1290 = vmatprep.subr.mxu0 0.0
      %1291 = vmatpush1.msra.mxu0 %v1261
      %1292 = vmatprep.subr.mxu0 0.0
      %1293 = vmatpush1.msra.mxu0 %v1262
      %1294 = vmatprep.subr.mxu0 0.0
      %1295 = vmatpush1.msra.mxu0 %v1263
      %1296 = vmatprep.subr.mxu0 0.0
      %1297 = vmatpush1.msra.mxu0 %v1264
      %1298 = vmatprep.subr.mxu0 0.0
      %1299 = vmatpush1.msra.mxu0 %v1265
      %1300 = vmatprep.subr.mxu0 0.0
      %1301 = vmatpush1.msra.mxu0 %v1266
      %1302 = vmatprep.subr.mxu0 0.0
      %1303 = vmatpush1.msra.mxu0 %v1267
      %1304 = vmatprep.subr.mxu0 0.0
      %1305 = vmatpush1.msra.mxu0 %v1268
      %1306 = vmatprep.subr.mxu0 0.0
      %1307 = vmatpush1.msra.mxu0 %v1269
      %1308 = vmatprep.subr.mxu0 0.0
      %1309 = vmatpush1.msra.mxu0 %v1270
      %1310 = vmatprep.subr.mxu0 0.0
      %1311 = vmatpush1.msra.mxu0 0.0
      %1312 = vmatprep.subr.mxu0 0.0
      %1313 = vmatpush1.msra.mxu0 0.0
      %1314 = vmatprep.subr.mxu0 0.0
      %1315 = vmatpush1.msra.mxu0 0.0
      %1316 = vmatprep.subr.mxu0 0.0
      %1317 = vmatpush1.msra.mxu0 0.0
      %1318 = vmatprep.subr.mxu0 0.0
      %1319 = vmatpush1.msra.mxu0 0.0
      %1320 = vmatprep.subr.mxu0 0.0
      %1321 = vmatpush1.msra.mxu0 0.0
      %1322 = vmatprep.subr.mxu0 0.0
      %1323 = vmatpush1.msra.mxu0 0.0
      %1324 = vmatprep.subr.mxu0 0.0
      %1325 = vmatpush1.msra.mxu0 0.0
      %1326 = vmatprep.subr.mxu0 0.0
      %1327 = vmatpush1.msra.mxu0 0.0
      %1328 = vmatprep.subr.mxu0 0.0
      %1329 = vmatpush1.msra.mxu0 0.0
      %1330 = vmatprep.subr.mxu0 0.0
      %1331 = vmatpush1.msra.mxu0 0.0
      %1332 = vmatprep.subr.mxu0 0.0
      %1333 = vmatpush1.msra.mxu0 0.0
      %1334 = vmatprep.subr.mxu0 0.0
      %1335 = vmatpush1.msra.mxu0 0.0
      %1336 = vmatprep.subr.mxu0 0.0
      %1337 = vmatpush1.msra.mxu0 0.0
      %1338 = vmatprep.subr.mxu0 0.0
      %1339 = vmatpush1.msra.mxu0 0.0
      %1340 = vmatprep.subr.mxu0 0.0
      %1341 = vmatpush1.msra.mxu0 0.0
      %1342 = vmatprep.mubr.f32.mxu0 0.0
      %1343 = vmatmul.mubr.f32.gmra.mrb[0].mxu0 %v1249
      %v1344 = vpop.f32.mrb[0].mxu0
      %v1345 = vadd.f32 %v1276, %v1344
      %v1346 = vpop.f32.mrb[0].mxu0
      %1347 = vdwg.mxu0
      %v1348 = vxor.u32 %v1345, 2147483648
      %v1349 = vmul.f32 %v1348, 1.442695
      %v1350 = vpow.pop %v1349
      %v1351 = vadd.f32 %v1350, 1.0
      %v1352 = vrcp.pop %v1351
      %v1353 = vmul.f32 1.0, %v1352
      %1354 = vst [vmem:[#allocation4] sm:$0x3] %v1353
    $region25: #{lstm_classifier_forward.3} parent=1 // pred_fallthru
      _
    // Predicated region
    $region26: #{lstm_classifier_forward.3} parent=1 // pred_check
      _
    $region27: #{lstm_classifier_forward.3} parent=1 // pred_check_branch
      %1356 = sbr.rel (0) target = $region29
    $region28: #{lstm_classifier_forward.3} parent=1 // pred_region
      %s1358 = ssub.s32 32, 32
      %1359 = vsyncadd [#allocation5], %s1358
      %s1361 = sshll.u32 [#allocation4], 4
      %s1362 = int_to_ptr.vmem [resolvable:$true] %s1361
      %1364 = dma.vmem_to_hbm [thread:$0]  %s1362, 32, %s4, [#allocation5]
    $region29: #{lstm_classifier_forward.3} parent=1 // pred_fallthru
      _
    // Predicated region
    $region30: #{lstm_classifier_forward.3} parent=1 // pred_check
      _
    $region31: #{lstm_classifier_forward.3} parent=1 // pred_check_branch
      %1366 = sbr.rel (0) target = $region33
    $region32: #{lstm_classifier_forward.3} parent=1 // pred_region
      %1367 = dma.done [#allocation5], 32
    $region33: #{lstm_classifier_forward.3} parent=1 // pred_fallthru
      _
    %1368 = vsyncpa [#allocation5], 1

// kernel: lstm_classifier_forward.2
$region0: #{lstm_classifier_forward.2}
  #allocation0 [shape = 'u32[]', space=smem, size = 0x4, offset = 0x4, fixed_abs, tag = 'smem constant byte address 0x4 - core index']
  #allocation1 [shape = 'u32[144,128]{1,0:T(1,128)}', space=vmem, size = 0x12000, scoped, tag = 'internal scratch']
  %s0 = inlined_call_operand.hbm [shape: f32[16,768], index: 0, kind: input, shape index: {}]
  %s1 = inlined_call_operand.hbm [shape: bf16[768,512], index: 1, kind: input, shape index: {}]
  %s2 = inlined_call_operand.vmem [shape: f32[1,512], index: 2, kind: input, shape index: {}]
  %s3 = inlined_call_operand.vmem [shape: bf16[16,512], index: 3, kind: output, shape index: {}]
  %s4 = sld [smem:[#allocation0]]
  $region30: #{lstm_classifier_forward.2} parent=0
    _
  %s6 = ssub.s32 1, %s4
  %s7 = scalar_select 0, %s6, %s4
  $region1: #{lstm_classifier_forward.2} parent=0
    #allocation2 [shape = 'u8[49152]{0}', space=vmem, size = 0xc000, scoped, tag = 'input window, operand 0, single buffered']
    #allocation3 [shape = 's32[1]{0}', space=sflag, size = 0x4, scoped, tag = 'scoped memory for lstm_classifier_forward.2']
    #allocation4 [shape = 'u8[786432]{0}', space=vmem, size = 0xc0000, scoped, tag = 'input window, operand 1, single buffered']
    #allocation5 [shape = 's32[1]{0}', space=sflag, size = 0x4, scoped, tag = 'scoped memory for lstm_classifier_forward.2']
    %8 = vsyncpa [#allocation3], 0
    %9 = vsyncpa [#allocation5], 0
    // Predicated region
    $region2: #{lstm_classifier_forward.2} parent=1 // pred_check
      _
    $region3: #{lstm_classifier_forward.2} parent=1 // pred_check_branch
      %11 = sbr.rel (0) target = $region5
    $region4: #{lstm_classifier_forward.2} parent=1 // pred_region
      %s13 = ssub.s32 1536, 1536
      %14 = vsyncadd [#allocation3], %s13
      %s15 = sshll.u32 [#allocation2], 4
      %s16 = int_to_ptr.vmem [resolvable:$true] %s15
      %21 = dma.hbm_to_vmem [thread:$0]  %s0, 1536, %s16, [#allocation3], 768, 768, 48
    $region5: #{lstm_classifier_forward.2} parent=1 // pred_fallthru
      _
    // Predicated region
    $region6: #{lstm_classifier_forward.2} parent=1 // pred_check
      _
    $region7: #{lstm_classifier_forward.2} parent=1 // pred_check_branch
      %23 = sbr.rel (0) target = $region9
    $region8: #{lstm_classifier_forward.2} parent=1 // pred_region
      %s25 = ssub.s32 24576, 24576
      %26 = vsyncadd [#allocation5], %s25
      %s27 = sshll.u32 [#allocation4], 4
      %s28 = int_to_ptr.vmem [resolvable:$true] %s27
      %33 = dma.hbm_to_vmem [thread:$0]  %s1, 24576, %s28, [#allocation5], 256, 256, 16
    $region9: #{lstm_classifier_forward.2} parent=1 // pred_fallthru
      _
    // Predicated region
    $region10: #{lstm_classifier_forward.2} parent=1 // pred_check
      _
    $region11: #{lstm_classifier_forward.2} parent=1 // pred_check_branch
      %35 = sbr.rel (0) target = $region13
    $region12: #{lstm_classifier_forward.2} parent=1 // pred_region
      _
    $region13: #{lstm_classifier_forward.2} parent=1 // pred_fallthru
      _
    // Predicated region
    $region14: #{lstm_classifier_forward.2} parent=1 // pred_check
      _
    $region15: #{lstm_classifier_forward.2} parent=1 // pred_check_branch
      %37 = sbr.rel (0) target = $region17
    $region16: #{lstm_classifier_forward.2} parent=1 // pred_region
      %38 = dma.done [#allocation3], 1536
    $region17: #{lstm_classifier_forward.2} parent=1 // pred_fallthru
      _
    // Predicated region
    $region18: #{lstm_classifier_forward.2} parent=1 // pred_check
      _
    $region19: #{lstm_classifier_forward.2} parent=1 // pred_check_branch
      %40 = sbr.rel (0) target = $region21
    $region20: #{lstm_classifier_forward.2} parent=1 // pred_region
      %41 = dma.done [#allocation5], 24576
    $region21: #{lstm_classifier_forward.2} parent=1 // pred_fallthru
      _
    %v42 = vld [vmem:[#allocation2] sm:$0xff]
    %v43 = vld [vmem:[#allocation2 + $0x8] sm:$0xff]
    %v44 = vld [vmem:[#allocation2 + $0x10] sm:$0xff]
    %v45 = vld [vmem:[#allocation2 + $0x18] sm:$0xff]
    %v46 = vld [vmem:[#allocation2 + $0x20] sm:$0xff]
    %v47 = vld [vmem:[#allocation2 + $0x28] sm:$0xff]
    %v48 = vld [vmem:[#allocation2 + $0x30] sm:$0xff]
    %v49 = vld [vmem:[#allocation2 + $0x38] sm:$0xff]
    %v50 = vld [vmem:[#allocation2 + $0x40] sm:$0xff]
    %v51 = vld [vmem:[#allocation2 + $0x48] sm:$0xff]
    %v52 = vld [vmem:[#allocation2 + $0x50] sm:$0xff]
    %v53 = vld [vmem:[#allocation2 + $0x58] sm:$0xff]
    %v54 = vpack.c.bf16 %v48, %v42
    %v55 = vpack.c.bf16 %v49, %v43
    %v56 = vpack.c.bf16 %v50, %v44
    %v57 = vpack.c.bf16 %v51, %v45
    %v58 = vpack.c.bf16 %v52, %v46
    %v59 = vpack.c.bf16 %v53, %v47
    %v60 = vld [vmem:[#allocation4] sm:$0xff]
    %v61 = vld [vmem:[#allocation4 + $0x8] sm:$0xff]
    %v62 = vld [vmem:[#allocation4 + $0x10] sm:$0xff]
    %v63 = vld [vmem:[#allocation4 + $0x18] sm:$0xff]
    %v64 = vld [vmem:[#allocation4 + $0x20] sm:$0xff]
    %v65 = vld [vmem:[#allocation4 + $0x28] sm:$0xff]
    %v66 = vld [vmem:[#allocation4 + $0x30] sm:$0xff]
    %v67 = vld [vmem:[#allocation4 + $0x38] sm:$0xff]
    %v68 = vld [vmem:[#allocation4 + $0x40] sm:$0xff]
    %v69 = vld [vmem:[#allocation4 + $0x48] sm:$0xff]
    %v70 = vld [vmem:[#allocation4 + $0x50] sm:$0xff]
    %v71 = vld [vmem:[#allocation4 + $0x58] sm:$0xff]
    %v72 = vld [vmem:[#allocation4 + $0x60] sm:$0xff]
    %v73 = vld [vmem:[#allocation4 + $0x68] sm:$0xff]
    %v74 = vld [vmem:[#allocation4 + $0x70] sm:$0xff]
    %v75 = vld [vmem:[#allocation4 + $0x78] sm:$0xff]
    %v76 = vld [vmem:[#allocation4 + $0x80] sm:$0xff]
    %v77 = vld [vmem:[#allocation4 + $0x88] sm:$0xff]
    %v78 = vld [vmem:[#allocation4 + $0x90] sm:$0xff]
    %v79 = vld [vmem:[#allocation4 + $0x98] sm:$0xff]
    %v80 = vld [vmem:[#allocation4 + $0xa0] sm:$0xff]
    %v81 = vld [vmem:[#allocation4 + $0xa8] sm:$0xff]
    %v82 = vld [vmem:[#allocation4 + $0xb0] sm:$0xff]
    %v83 = vld [vmem:[#allocation4 + $0xb8] sm:$0xff]
    %v84 = vld [vmem:[#allocation4 + $0xc0] sm:$0xff]
    %v85 = vld [vmem:[#allocation4 + $0xc8] sm:$0xff]
    %v86 = vld [vmem:[#allocation4 + $0xd0] sm:$0xff]
    %v87 = vld [vmem:[#allocation4 + $0xd8] sm:$0xff]
    %v88 = vld [vmem:[#allocation4 + $0xe0] sm:$0xff]
    %v89 = vld [vmem:[#allocation4 + $0xe8] sm:$0xff]
    %v90 = vld [vmem:[#allocation4 + $0xf0] sm:$0xff]
    %v91 = vld [vmem:[#allocation4 + $0xf8] sm:$0xff]
    %v92 = vld [vmem:[#allocation4 + $0x100] sm:$0xff]
    %v93 = vld [vmem:[#allocation4 + $0x108] sm:$0xff]
    %v94 = vld [vmem:[#allocation4 + $0x110] sm:$0xff]
    %v95 = vld [vmem:[#allocation4 + $0x118] sm:$0xff]
    %v96 = vld [vmem:[#allocation4 + $0x120] sm:$0xff]
    %v97 = vld [vmem:[#allocation4 + $0x128] sm:$0xff]
    %v98 = vld [vmem:[#allocation4 + $0x130] sm:$0xff]
    %v99 = vld [vmem:[#allocation4 + $0x138] sm:$0xff]
    %v100 = vld [vmem:[#allocation4 + $0x140] sm:$0xff]
    %v101 = vld [vmem:[#allocation4 + $0x148] sm:$0xff]
    %v102 = vld [vmem:[#allocation4 + $0x150] sm:$0xff]
    %v103 = vld [vmem:[#allocation4 + $0x158] sm:$0xff]
    %v104 = vld [vmem:[#allocation4 + $0x160] sm:$0xff]
    %v105 = vld [vmem:[#allocation4 + $0x168] sm:$0xff]
    %v106 = vld [vmem:[#allocation4 + $0x170] sm:$0xff]
    %v107 = vld [vmem:[#allocation4 + $0x178] sm:$0xff]
    %v108 = vld [vmem:[#allocation4 + $0x180] sm:$0xff]
    %v109 = vld [vmem:[#allocation4 + $0x188] sm:$0xff]
    %v110 = vld [vmem:[#allocation4 + $0x190] sm:$0xff]
    %v111 = vld [vmem:[#allocation4 + $0x198] sm:$0xff]
    %v112 = vld [vmem:[#allocation4 + $0x1a0] sm:$0xff]
    %v113 = vld [vmem:[#allocation4 + $0x1a8] sm:$0xff]
    %v114 = vld [vmem:[#allocation4 + $0x1b0] sm:$0xff]
    %v115 = vld [vmem:[#allocation4 + $0x1b8] sm:$0xff]
    %v116 = vld [vmem:[#allocation4 + $0x1c0] sm:$0xff]
    %v117 = vld [vmem:[#allocation4 + $0x1c8] sm:$0xff]
    %v118 = vld [vmem:[#allocation4 + $0x1d0] sm:$0xff]
    %v119 = vld [vmem:[#allocation4 + $0x1d8] sm:$0xff]
    %v120 = vld [vmem:[#allocation4 + $0x1e0] sm:$0xff]
    %v121 = vld [vmem:[#allocation4 + $0x1e8] sm:$0xff]
    %v122 = vld [vmem:[#allocation4 + $0x1f0] sm:$0xff]
    %v123 = vld [vmem:[#allocation4 + $0x1f8] sm:$0xff]
    %v124 = vld [vmem:[#allocation4 + $0x200] sm:$0xff]
    %v125 = vld [vmem:[#allocation4 + $0x208] sm:$0xff]
    %v126 = vld [vmem:[#allocation4 + $0x210] sm:$0xff]
    %v127 = vld [vmem:[#allocation4 + $0x218] sm:$0xff]
    %v128 = vld [vmem:[#allocation4 + $0x220] sm:$0xff]
    %v129 = vld [vmem:[#allocation4 + $0x228] sm:$0xff]
    %v130 = vld [vmem:[#allocation4 + $0x230] sm:$0xff]
    %v131 = vld [vmem:[#allocation4 + $0x238] sm:$0xff]
    %v132 = vld [vmem:[#allocation4 + $0x240] sm:$0xff]
    %v133 = vld [vmem:[#allocation4 + $0x248] sm:$0xff]
    %v134 = vld [vmem:[#allocation4 + $0x250] sm:$0xff]
    %v135 = vld [vmem:[#allocation4 + $0x258] sm:$0xff]
    %v136 = vld [vmem:[#allocation4 + $0x260] sm:$0xff]
    %v137 = vld [vmem:[#allocation4 + $0x268] sm:$0xff]
    %v138 = vld [vmem:[#allocation4 + $0x270] sm:$0xff]
    %v139 = vld [vmem:[#allocation4 + $0x278] sm:$0xff]
    %v140 = vld [vmem:[#allocation4 + $0x280] sm:$0xff]
    %v141 = vld [vmem:[#allocation4 + $0x288] sm:$0xff]
    %v142 = vld [vmem:[#allocation4 + $0x290] sm:$0xff]
    %v143 = vld [vmem:[#allocation4 + $0x298] sm:$0xff]
    %v144 = vld [vmem:[#allocation4 + $0x2a0] sm:$0xff]
    %v145 = vld [vmem:[#allocation4 + $0x2a8] sm:$0xff]
    %v146 = vld [vmem:[#allocation4 + $0x2b0] sm:$0xff]
    %v147 = vld [vmem:[#allocation4 + $0x2b8] sm:$0xff]
    %v148 = vld [vmem:[#allocation4 + $0x2c0] sm:$0xff]
    %v149 = vld [vmem:[#allocation4 + $0x2c8] sm:$0xff]
    %v150 = vld [vmem:[#allocation4 + $0x2d0] sm:$0xff]
    %v151 = vld [vmem:[#allocation4 + $0x2d8] sm:$0xff]
    %v152 = vld [vmem:[#allocation4 + $0x2e0] sm:$0xff]
    %v153 = vld [vmem:[#allocation4 + $0x2e8] sm:$0xff]
    %v154 = vld [vmem:[#allocation4 + $0x2f0] sm:$0xff]
    %v155 = vld [vmem:[#allocation4 + $0x2f8] sm:$0xff]
    %v156 = vld [vmem:[#allocation4 + $0x300] sm:$0xff]
    %v157 = vld [vmem:[#allocation4 + $0x308] sm:$0xff]
    %v158 = vld [vmem:[#allocation4 + $0x310] sm:$0xff]
    %v159 = vld [vmem:[#allocation4 + $0x318] sm:$0xff]
    %v160 = vld [vmem:[#allocation4 + $0x320] sm:$0xff]
    %v161 = vld [vmem:[#allocation4 + $0x328] sm:$0xff]
    %v162 = vld [vmem:[#allocation4 + $0x330] sm:$0xff]
    %v163 = vld [vmem:[#allocation4 + $0x338] sm:$0xff]
    %v164 = vld [vmem:[#allocation4 + $0x340] sm:$0xff]
    %v165 = vld [vmem:[#allocation4 + $0x348] sm:$0xff]
    %v166 = vld [vmem:[#allocation4 + $0x350] sm:$0xff]
    %v167 = vld [vmem:[#allocation4 + $0x358] sm:$0xff]
    %v168 = vld [vmem:[#allocation4 + $0x360] sm:$0xff]
    %v169 = vld [vmem:[#allocation4 + $0x368] sm:$0xff]
    %v170 = vld [vmem:[#allocation4 + $0x370] sm:$0xff]
    %v171 = vld [vmem:[#allocation4 + $0x378] sm:$0xff]
    %v172 = vld [vmem:[#allocation4 + $0x380] sm:$0xff]
    %v173 = vld [vmem:[#allocation4 + $0x388] sm:$0xff]
    %v174 = vld [vmem:[#allocation4 + $0x390] sm:$0xff]
    %v175 = vld [vmem:[#allocation4 + $0x398] sm:$0xff]
    %v176 = vld [vmem:[#allocation4 + $0x3a0] sm:$0xff]
    %v177 = vld [vmem:[#allocation4 + $0x3a8] sm:$0xff]
    %v178 = vld [vmem:[#allocation4 + $0x3b0] sm:$0xff]
    %v179 = vld [vmem:[#allocation4 + $0x3b8] sm:$0xff]
    %v180 = vld [vmem:[#allocation4 + $0x3c0] sm:$0xff]
    %v181 = vld [vmem:[#allocation4 + $0x3c8] sm:$0xff]
    %v182 = vld [vmem:[#allocation4 + $0x3d0] sm:$0xff]
    %v183 = vld [vmem:[#allocation4 + $0x3d8] sm:$0xff]
    %v184 = vld [vmem:[#allocation4 + $0x3e0] sm:$0xff]
    %v185 = vld [vmem:[#allocation4 + $0x3e8] sm:$0xff]
    %v186 = vld [vmem:[#allocation4 + $0x3f0] sm:$0xff]
    %v187 = vld [vmem:[#allocation4 + $0x3f8] sm:$0xff]
    %v188 = vld [vmem:[#allocation4 + $0x400] sm:$0xff]
    %v189 = vld [vmem:[#allocation4 + $0x408] sm:$0xff]
    %v190 = vld [vmem:[#allocation4 + $0x410] sm:$0xff]
    %v191 = vld [vmem:[#allocation4 + $0x418] sm:$0xff]
    %v192 = vld [vmem:[#allocation4 + $0x420] sm:$0xff]
    %v193 = vld [vmem:[#allocation4 + $0x428] sm:$0xff]
    %v194 = vld [vmem:[#allocation4 + $0x430] sm:$0xff]
    %v195 = vld [vmem:[#allocation4 + $0x438] sm:$0xff]
    %v196 = vld [vmem:[#allocation4 + $0x440] sm:$0xff]
    %v197 = vld [vmem:[#allocation4 + $0x448] sm:$0xff]
    %v198 = vld [vmem:[#allocation4 + $0x450] sm:$0xff]
    %v199 = vld [vmem:[#allocation4 + $0x458] sm:$0xff]
    %v200 = vld [vmem:[#allocation4 + $0x460] sm:$0xff]
    %v201 = vld [vmem:[#allocation4 + $0x468] sm:$0xff]
    %v202 = vld [vmem:[#allocation4 + $0x470] sm:$0xff]
    %v203 = vld [vmem:[#allocation4 + $0x478] sm:$0xff]
    %v204 = vld [vmem:[#allocation4 + $0x480] sm:$0xff]
    %v205 = vld [vmem:[#allocation4 + $0x488] sm:$0xff]
    %v206 = vld [vmem:[#allocation4 + $0x490] sm:$0xff]
    %v207 = vld [vmem:[#allocation4 + $0x498] sm:$0xff]
    %v208 = vld [vmem:[#allocation4 + $0x4a0] sm:$0xff]
    %v209 = vld [vmem:[#allocation4 + $0x4a8] sm:$0xff]
    %v210 = vld [vmem:[#allocation4 + $0x4b0] sm:$0xff]
    %v211 = vld [vmem:[#allocation4 + $0x4b8] sm:$0xff]
    %v212 = vld [vmem:[#allocation4 + $0x4c0] sm:$0xff]
    %v213 = vld [vmem:[#allocation4 + $0x4c8] sm:$0xff]
    %v214 = vld [vmem:[#allocation4 + $0x4d0] sm:$0xff]
    %v215 = vld [vmem:[#allocation4 + $0x4d8] sm:$0xff]
    %v216 = vld [vmem:[#allocation4 + $0x4e0] sm:$0xff]
    %v217 = vld [vmem:[#allocation4 + $0x4e8] sm:$0xff]
    %v218 = vld [vmem:[#allocation4 + $0x4f0] sm:$0xff]
    %v219 = vld [vmem:[#allocation4 + $0x4f8] sm:$0xff]
    %v220 = vld [vmem:[#allocation4 + $0x500] sm:$0xff]
    %v221 = vld [vmem:[#allocation4 + $0x508] sm:$0xff]
    %v222 = vld [vmem:[#allocation4 + $0x510] sm:$0xff]
    %v223 = vld [vmem:[#allocation4 + $0x518] sm:$0xff]
    %v224 = vld [vmem:[#allocation4 + $0x520] sm:$0xff]
    %v225 = vld [vmem:[#allocation4 + $0x528] sm:$0xff]
    %v226 = vld [vmem:[#allocation4 + $0x530] sm:$0xff]
    %v227 = vld [vmem:[#allocation4 + $0x538] sm:$0xff]
    %v228 = vld [vmem:[#allocation4 + $0x540] sm:$0xff]
    %v229 = vld [vmem:[#allocation4 + $0x548] sm:$0xff]
    %v230 = vld [vmem:[#allocation4 + $0x550] sm:$0xff]
    %v231 = vld [vmem:[#allocation4 + $0x558] sm:$0xff]
    %v232 = vld [vmem:[#allocation4 + $0x560] sm:$0xff]
    %v233 = vld [vmem:[#allocation4 + $0x568] sm:$0xff]
    %v234 = vld [vmem:[#allocation4 + $0x570] sm:$0xff]
    %v235 = vld [vmem:[#allocation4 + $0x578] sm:$0xff]
    %v236 = vld [vmem:[#allocation4 + $0x580] sm:$0xff]
    %v237 = vld [vmem:[#allocation4 + $0x588] sm:$0xff]
    %v238 = vld [vmem:[#allocation4 + $0x590] sm:$0xff]
    %v239 = vld [vmem:[#allocation4 + $0x598] sm:$0xff]
    %v240 = vld [vmem:[#allocation4 + $0x5a0] sm:$0xff]
    %v241 = vld [vmem:[#allocation4 + $0x5a8] sm:$0xff]
    %v242 = vld [vmem:[#allocation4 + $0x5b0] sm:$0xff]
    %v243 = vld [vmem:[#allocation4 + $0x5b8] sm:$0xff]
    %v244 = vld [vmem:[#allocation4 + $0x5c0] sm:$0xff]
    %v245 = vld [vmem:[#allocation4 + $0x5c8] sm:$0xff]
    %v246 = vld [vmem:[#allocation4 + $0x5d0] sm:$0xff]
    %v247 = vld [vmem:[#allocation4 + $0x5d8] sm:$0xff]
    %v248 = vld [vmem:[#allocation4 + $0x5e0] sm:$0xff]
    %v249 = vld [vmem:[#allocation4 + $0x5e8] sm:$0xff]
    %v250 = vld [vmem:[#allocation4 + $0x5f0] sm:$0xff]
    %v251 = vld [vmem:[#allocation4 + $0x5f8] sm:$0xff]
    %v252 = vld [vmem:[%s2] sm:$0xf]
    %v254 = vlaneseq
    %v255 = vshrl.u32 %v254, 7
    %v256 = vsub.s32 0, %v255
    %v257 = vrot.slane %v252, %v256
    %v258 = vlaneseq
    %v259 = vshrl.u32 %v258, 7
    %v260 = vsub.s32 1, %v259
    %v261 = vrot.slane %v252, %v260
    %v262 = vlaneseq
    %v263 = vshrl.u32 %v262, 7
    %v264 = vsub.s32 2, %v263
    %v265 = vrot.slane %v252, %v264
    %v266 = vlaneseq
    %v267 = vshrl.u32 %v266, 7
    %v268 = vsub.s32 3, %v267
    %v269 = vrot.slane %v252, %v268
    %v466 = vunpack.c.l.b16 %v60
    %v467 = vunpack.c.h.b16 %v60
    %v468 = vunpack.c.l.b16 %v61
    %v469 = vunpack.c.h.b16 %v61
    %v470 = vunpack.c.l.b16 %v62
    %v471 = vunpack.c.h.b16 %v62
    %v472 = vunpack.c.l.b16 %v63
    %v473 = vunpack.c.h.b16 %v63
    %v474 = vunpack.c.l.b16 %v64
    %v475 = vunpack.c.h.b16 %v64
    %v476 = vunpack.c.l.b16 %v65
    %v477 = vunpack.c.h.b16 %v65
    %v478 = vunpack.c.l.b16 %v66
    %v479 = vunpack.c.h.b16 %v66
    %v480 = vunpack.c.l.b16 %v67
    %v481 = vunpack.c.h.b16 %v67
    %v482 = vunpack.c.l.b16 %v68
    %v483 = vunpack.c.h.b16 %v68
    %v484 = vunpack.c.l.b16 %v69
    %v485 = vunpack.c.h.b16 %v69
    %v486 = vunpack.c.l.b16 %v70
    %v487 = vunpack.c.h.b16 %v70
    %v488 = vunpack.c.l.b16 %v71
    %v489 = vunpack.c.h.b16 %v71
    %v490 = vunpack.c.l.b16 %v72
    %v491 = vunpack.c.h.b16 %v72
    %v492 = vunpack.c.l.b16 %v73
    %v493 = vunpack.c.h.b16 %v73
    %v494 = vunpack.c.l.b16 %v74
    %v495 = vunpack.c.h.b16 %v74
    %v496 = vunpack.c.l.b16 %v75
    %v497 = vunpack.c.h.b16 %v75
    %v498 = vunpack.c.l.b16 %v76
    %v499 = vunpack.c.h.b16 %v76
    %v500 = vunpack.c.l.b16 %v77
    %v501 = vunpack.c.h.b16 %v77
    %v502 = vunpack.c.l.b16 %v78
    %v503 = vunpack.c.h.b16 %v78
    %v504 = vunpack.c.l.b16 %v79
    %v505 = vunpack.c.h.b16 %v79
    %v506 = vunpack.c.l.b16 %v80
    %v507 = vunpack.c.h.b16 %v80
    %v508 = vunpack.c.l.b16 %v81
    %v509 = vunpack.c.h.b16 %v81
    %v510 = vunpack.c.l.b16 %v82
    %v511 = vunpack.c.h.b16 %v82
    %v512 = vunpack.c.l.b16 %v83
    %v513 = vunpack.c.h.b16 %v83
    %v514 = vunpack.c.l.b16 %v84
    %v515 = vunpack.c.h.b16 %v84
    %v516 = vunpack.c.l.b16 %v85
    %v517 = vunpack.c.h.b16 %v85
    %v518 = vunpack.c.l.b16 %v86
    %v519 = vunpack.c.h.b16 %v86
    %v520 = vunpack.c.l.b16 %v87
    %v521 = vunpack.c.h.b16 %v87
    %v522 = vunpack.c.l.b16 %v88
    %v523 = vunpack.c.h.b16 %v88
    %v524 = vunpack.c.l.b16 %v89
    %v525 = vunpack.c.h.b16 %v89
    %v526 = vunpack.c.l.b16 %v90
    %v527 = vunpack.c.h.b16 %v90
    %v528 = vunpack.c.l.b16 %v91
    %v529 = vunpack.c.h.b16 %v91
    %v530 = vunpack.c.l.b16 %v92
    %v531 = vunpack.c.h.b16 %v92
    %v532 = vunpack.c.l.b16 %v93
    %v533 = vunpack.c.h.b16 %v93
    %v534 = vunpack.c.l.b16 %v94
    %v535 = vunpack.c.h.b16 %v94
    %v536 = vunpack.c.l.b16 %v95
    %v537 = vunpack.c.h.b16 %v95
    %v538 = vunpack.c.l.b16 %v96
    %v539 = vunpack.c.h.b16 %v96
    %v540 = vunpack.c.l.b16 %v97
    %v541 = vunpack.c.h.b16 %v97
    %v542 = vunpack.c.l.b16 %v98
    %v543 = vunpack.c.h.b16 %v98
    %v544 = vunpack.c.l.b16 %v99
    %v545 = vunpack.c.h.b16 %v99
    %v546 = vunpack.c.l.b16 %v100
    %v547 = vunpack.c.h.b16 %v100
    %v548 = vunpack.c.l.b16 %v101
    %v549 = vunpack.c.h.b16 %v101
    %v550 = vunpack.c.l.b16 %v102
    %v551 = vunpack.c.h.b16 %v102
    %v552 = vunpack.c.l.b16 %v103
    %v553 = vunpack.c.h.b16 %v103
    %v554 = vunpack.c.l.b16 %v104
    %v555 = vunpack.c.h.b16 %v104
    %v556 = vunpack.c.l.b16 %v105
    %v557 = vunpack.c.h.b16 %v105
    %v558 = vunpack.c.l.b16 %v106
    %v559 = vunpack.c.h.b16 %v106
    %v560 = vunpack.c.l.b16 %v107
    %v561 = vunpack.c.h.b16 %v107
    %v562 = vunpack.c.l.b16 %v108
    %v563 = vunpack.c.h.b16 %v108
    %v564 = vunpack.c.l.b16 %v109
    %v565 = vunpack.c.h.b16 %v109
    %v566 = vunpack.c.l.b16 %v110
    %v567 = vunpack.c.h.b16 %v110
    %v568 = vunpack.c.l.b16 %v111
    %v569 = vunpack.c.h.b16 %v111
    %v570 = vunpack.c.l.b16 %v112
    %v571 = vunpack.c.h.b16 %v112
    %v572 = vunpack.c.l.b16 %v113
    %v573 = vunpack.c.h.b16 %v113
    %v574 = vunpack.c.l.b16 %v114
    %v575 = vunpack.c.h.b16 %v114
    %v576 = vunpack.c.l.b16 %v115
    %v577 = vunpack.c.h.b16 %v115
    %v578 = vunpack.c.l.b16 %v116
    %v579 = vunpack.c.h.b16 %v116
    %v580 = vunpack.c.l.b16 %v117
    %v581 = vunpack.c.h.b16 %v117
    %v582 = vunpack.c.l.b16 %v118
    %v583 = vunpack.c.h.b16 %v118
    %v584 = vunpack.c.l.b16 %v119
    %v585 = vunpack.c.h.b16 %v119
    %v586 = vunpack.c.l.b16 %v120
    %v587 = vunpack.c.h.b16 %v120
    %v588 = vunpack.c.l.b16 %v121
    %v589 = vunpack.c.h.b16 %v121
    %v590 = vunpack.c.l.b16 %v122
    %v591 = vunpack.c.h.b16 %v122
    %v592 = vunpack.c.l.b16 %v123
    %v593 = vunpack.c.h.b16 %v123
    %v594 = vunpack.c.l.b16 %v124
    %v595 = vunpack.c.h.b16 %v124
    %v596 = vunpack.c.l.b16 %v125
    %v597 = vunpack.c.h.b16 %v125
    %v598 = vunpack.c.l.b16 %v126
    %v599 = vunpack.c.h.b16 %v126
    %v600 = vunpack.c.l.b16 %v127
    %v601 = vunpack.c.h.b16 %v127
    %v602 = vunpack.c.l.b16 %v128
    %v603 = vunpack.c.h.b16 %v128
    %v604 = vunpack.c.l.b16 %v129
    %v605 = vunpack.c.h.b16 %v129
    %v606 = vunpack.c.l.b16 %v130
    %v607 = vunpack.c.h.b16 %v130
    %v608 = vunpack.c.l.b16 %v131
    %v609 = vunpack.c.h.b16 %v131
    %v610 = vunpack.c.l.b16 %v132
    %v611 = vunpack.c.h.b16 %v132
    %v612 = vunpack.c.l.b16 %v133
    %v613 = vunpack.c.h.b16 %v133
    %v614 = vunpack.c.l.b16 %v134
    %v615 = vunpack.c.h.b16 %v134
    %v616 = vunpack.c.l.b16 %v135
    %v617 = vunpack.c.h.b16 %v135
    %v618 = vunpack.c.l.b16 %v136
    %v619 = vunpack.c.h.b16 %v136
    %v620 = vunpack.c.l.b16 %v137
    %v621 = vunpack.c.h.b16 %v137
    %v622 = vunpack.c.l.b16 %v138
    %v623 = vunpack.c.h.b16 %v138
    %v624 = vunpack.c.l.b16 %v139
    %v625 = vunpack.c.h.b16 %v139
    %v626 = vunpack.c.l.b16 %v140
    %v627 = vunpack.c.h.b16 %v140
    %v628 = vunpack.c.l.b16 %v141
    %v629 = vunpack.c.h.b16 %v141
    %v630 = vunpack.c.l.b16 %v142
    %v631 = vunpack.c.h.b16 %v142
    %v632 = vunpack.c.l.b16 %v143
    %v633 = vunpack.c.h.b16 %v143
    %v634 = vunpack.c.l.b16 %v144
    %v635 = vunpack.c.h.b16 %v144
    %v636 = vunpack.c.l.b16 %v145
    %v637 = vunpack.c.h.b16 %v145
    %v638 = vunpack.c.l.b16 %v146
    %v639 = vunpack.c.h.b16 %v146
    %v640 = vunpack.c.l.b16 %v147
    %v641 = vunpack.c.h.b16 %v147
    %v642 = vunpack.c.l.b16 %v148
    %v643 = vunpack.c.h.b16 %v148
    %v644 = vunpack.c.l.b16 %v149
    %v645 = vunpack.c.h.b16 %v149
    %v646 = vunpack.c.l.b16 %v150
    %v647 = vunpack.c.h.b16 %v150
    %v648 = vunpack.c.l.b16 %v151
    %v649 = vunpack.c.h.b16 %v151
    %v650 = vunpack.c.l.b16 %v152
    %v651 = vunpack.c.h.b16 %v152
    %v652 = vunpack.c.l.b16 %v153
    %v653 = vunpack.c.h.b16 %v153
    %v654 = vunpack.c.l.b16 %v154
    %v655 = vunpack.c.h.b16 %v154
    %v656 = vunpack.c.l.b16 %v155
    %v657 = vunpack.c.h.b16 %v155
    %v658 = vunpack.c.l.b16 %v156
    %v659 = vunpack.c.h.b16 %v156
    %v660 = vunpack.c.l.b16 %v157
    %v661 = vunpack.c.h.b16 %v157
    %v662 = vunpack.c.l.b16 %v158
    %v663 = vunpack.c.h.b16 %v158
    %v664 = vunpack.c.l.b16 %v159
    %v665 = vunpack.c.h.b16 %v159
    %v666 = vunpack.c.l.b16 %v160
    %v667 = vunpack.c.h.b16 %v160
    %v668 = vunpack.c.l.b16 %v161
    %v669 = vunpack.c.h.b16 %v161
    %v670 = vunpack.c.l.b16 %v162
    %v671 = vunpack.c.h.b16 %v162
    %v672 = vunpack.c.l.b16 %v163
    %v673 = vunpack.c.h.b16 %v163
    %v674 = vunpack.c.l.b16 %v164
    %v675 = vunpack.c.h.b16 %v164
    %v676 = vunpack.c.l.b16 %v165
    %v677 = vunpack.c.h.b16 %v165
    %v678 = vunpack.c.l.b16 %v166
    %v679 = vunpack.c.h.b16 %v166
    %v680 = vunpack.c.l.b16 %v167
    %v681 = vunpack.c.h.b16 %v167
    %v682 = vunpack.c.l.b16 %v168
    %v683 = vunpack.c.h.b16 %v168
    %v684 = vunpack.c.l.b16 %v169
    %v685 = vunpack.c.h.b16 %v169
    %v686 = vunpack.c.l.b16 %v170
    %v687 = vunpack.c.h.b16 %v170
    %v688 = vunpack.c.l.b16 %v171
    %v689 = vunpack.c.h.b16 %v171
    %v690 = vunpack.c.l.b16 %v172
    %v691 = vunpack.c.h.b16 %v172
    %v692 = vunpack.c.l.b16 %v173
    %v693 = vunpack.c.h.b16 %v173
    %v694 = vunpack.c.l.b16 %v174
    %v695 = vunpack.c.h.b16 %v174
    %v696 = vunpack.c.l.b16 %v175
    %v697 = vunpack.c.h.b16 %v175
    %v698 = vunpack.c.l.b16 %v176
    %v699 = vunpack.c.h.b16 %v176
    %v700 = vunpack.c.l.b16 %v177
    %v701 = vunpack.c.h.b16 %v177
    %v702 = vunpack.c.l.b16 %v178
    %v703 = vunpack.c.h.b16 %v178
    %v704 = vunpack.c.l.b16 %v179
    %v705 = vunpack.c.h.b16 %v179
    %v706 = vunpack.c.l.b16 %v180
    %v707 = vunpack.c.h.b16 %v180
    %v708 = vunpack.c.l.b16 %v181
    %v709 = vunpack.c.h.b16 %v181
    %v710 = vunpack.c.l.b16 %v182
    %v711 = vunpack.c.h.b16 %v182
    %v712 = vunpack.c.l.b16 %v183
    %v713 = vunpack.c.h.b16 %v183
    %v714 = vunpack.c.l.b16 %v184
    %v715 = vunpack.c.h.b16 %v184
    %v716 = vunpack.c.l.b16 %v185
    %v717 = vunpack.c.h.b16 %v185
    %v718 = vunpack.c.l.b16 %v186
    %v719 = vunpack.c.h.b16 %v186
    %v720 = vunpack.c.l.b16 %v187
    %v721 = vunpack.c.h.b16 %v187
    %v722 = vunpack.c.l.b16 %v188
    %v723 = vunpack.c.h.b16 %v188
    %v724 = vunpack.c.l.b16 %v189
    %v725 = vunpack.c.h.b16 %v189
    %v726 = vunpack.c.l.b16 %v190
    %v727 = vunpack.c.h.b16 %v190
    %v728 = vunpack.c.l.b16 %v191
    %v729 = vunpack.c.h.b16 %v191
    %v730 = vunpack.c.l.b16 %v192
    %v731 = vunpack.c.h.b16 %v192
    %v732 = vunpack.c.l.b16 %v193
    %v733 = vunpack.c.h.b16 %v193
    %v734 = vunpack.c.l.b16 %v194
    %v735 = vunpack.c.h.b16 %v194
    %v736 = vunpack.c.l.b16 %v195
    %v737 = vunpack.c.h.b16 %v195
    %v738 = vunpack.c.l.b16 %v196
    %v739 = vunpack.c.h.b16 %v196
    %v740 = vunpack.c.l.b16 %v197
    %v741 = vunpack.c.h.b16 %v197
    %v742 = vunpack.c.l.b16 %v198
    %v743 = vunpack.c.h.b16 %v198
    %v744 = vunpack.c.l.b16 %v199
    %v745 = vunpack.c.h.b16 %v199
    %v746 = vunpack.c.l.b16 %v200
    %v747 = vunpack.c.h.b16 %v200
    %v748 = vunpack.c.l.b16 %v201
    %v749 = vunpack.c.h.b16 %v201
    %v750 = vunpack.c.l.b16 %v202
    %v751 = vunpack.c.h.b16 %v202
    %v752 = vunpack.c.l.b16 %v203
    %v753 = vunpack.c.h.b16 %v203
    %v754 = vunpack.c.l.b16 %v204
    %v755 = vunpack.c.h.b16 %v204
    %v756 = vunpack.c.l.b16 %v205
    %v757 = vunpack.c.h.b16 %v205
    %v758 = vunpack.c.l.b16 %v206
    %v759 = vunpack.c.h.b16 %v206
    %v760 = vunpack.c.l.b16 %v207
    %v761 = vunpack.c.h.b16 %v207
    %v762 = vunpack.c.l.b16 %v208
    %v763 = vunpack.c.h.b16 %v208
    %v764 = vunpack.c.l.b16 %v209
    %v765 = vunpack.c.h.b16 %v209
    %v766 = vunpack.c.l.b16 %v210
    %v767 = vunpack.c.h.b16 %v210
    %v768 = vunpack.c.l.b16 %v211
    %v769 = vunpack.c.h.b16 %v211
    %v770 = vunpack.c.l.b16 %v212
    %v771 = vunpack.c.h.b16 %v212
    %v772 = vunpack.c.l.b16 %v213
    %v773 = vunpack.c.h.b16 %v213
    %v774 = vunpack.c.l.b16 %v214
    %v775 = vunpack.c.h.b16 %v214
    %v776 = vunpack.c.l.b16 %v215
    %v777 = vunpack.c.h.b16 %v215
    %v778 = vunpack.c.l.b16 %v216
    %v779 = vunpack.c.h.b16 %v216
    %v780 = vunpack.c.l.b16 %v217
    %v781 = vunpack.c.h.b16 %v217
    %v782 = vunpack.c.l.b16 %v218
    %v783 = vunpack.c.h.b16 %v218
    %v784 = vunpack.c.l.b16 %v219
    %v785 = vunpack.c.h.b16 %v219
    %v786 = vunpack.c.l.b16 %v220
    %v787 = vunpack.c.h.b16 %v220
    %v788 = vunpack.c.l.b16 %v221
    %v789 = vunpack.c.h.b16 %v221
    %v790 = vunpack.c.l.b16 %v222
    %v791 = vunpack.c.h.b16 %v222
    %v792 = vunpack.c.l.b16 %v223
    %v793 = vunpack.c.h.b16 %v223
    %v794 = vunpack.c.l.b16 %v224
    %v795 = vunpack.c.h.b16 %v224
    %v796 = vunpack.c.l.b16 %v225
    %v797 = vunpack.c.h.b16 %v225
    %v798 = vunpack.c.l.b16 %v226
    %v799 = vunpack.c.h.b16 %v226
    %v800 = vunpack.c.l.b16 %v227
    %v801 = vunpack.c.h.b16 %v227
    %v802 = vunpack.c.l.b16 %v228
    %v803 = vunpack.c.h.b16 %v228
    %v804 = vunpack.c.l.b16 %v229
    %v805 = vunpack.c.h.b16 %v229
    %v806 = vunpack.c.l.b16 %v230
    %v807 = vunpack.c.h.b16 %v230
    %v808 = vunpack.c.l.b16 %v231
    %v809 = vunpack.c.h.b16 %v231
    %v810 = vunpack.c.l.b16 %v232
    %v811 = vunpack.c.h.b16 %v232
    %v812 = vunpack.c.l.b16 %v233
    %v813 = vunpack.c.h.b16 %v233
    %v814 = vunpack.c.l.b16 %v234
    %v815 = vunpack.c.h.b16 %v234
    %v816 = vunpack.c.l.b16 %v235
    %v817 = vunpack.c.h.b16 %v235
    %v818 = vunpack.c.l.b16 %v236
    %v819 = vunpack.c.h.b16 %v236
    %v820 = vunpack.c.l.b16 %v237
    %v821 = vunpack.c.h.b16 %v237
    %v822 = vunpack.c.l.b16 %v238
    %v823 = vunpack.c.h.b16 %v238
    %v824 = vunpack.c.l.b16 %v239
    %v825 = vunpack.c.h.b16 %v239
    %v826 = vunpack.c.l.b16 %v240
    %v827 = vunpack.c.h.b16 %v240
    %v828 = vunpack.c.l.b16 %v241
    %v829 = vunpack.c.h.b16 %v241
    %v830 = vunpack.c.l.b16 %v242
    %v831 = vunpack.c.h.b16 %v242
    %v832 = vunpack.c.l.b16 %v243
    %v833 = vunpack.c.h.b16 %v243
    %v834 = vunpack.c.l.b16 %v244
    %v835 = vunpack.c.h.b16 %v244
    %v836 = vunpack.c.l.b16 %v245
    %v837 = vunpack.c.h.b16 %v245
    %v838 = vunpack.c.l.b16 %v246
    %v839 = vunpack.c.h.b16 %v246
    %v840 = vunpack.c.l.b16 %v247
    %v841 = vunpack.c.h.b16 %v247
    %v842 = vunpack.c.l.b16 %v248
    %v843 = vunpack.c.h.b16 %v248
    %v844 = vunpack.c.l.b16 %v249
    %v845 = vunpack.c.h.b16 %v249
    %v846 = vunpack.c.l.b16 %v250
    %v847 = vunpack.c.h.b16 %v250
    %v848 = vunpack.c.l.b16 %v251
    %v849 = vunpack.c.h.b16 %v251
    %v850 = vpack.c.b16 %v470, %v466
    %v851 = vpack.c.b16 %v471, %v467
    %v852 = vpack.c.b16 %v472, %v468
    %v853 = vpack.c.b16 %v473, %v469
    %v854 = vpack.c.b16 %v478, %v474
    %v855 = vpack.c.b16 %v479, %v475
    %v856 = vpack.c.b16 %v480, %v476
    %v857 = vpack.c.b16 %v481, %v477
    %v858 = vpack.c.b16 %v486, %v482
    %v859 = vpack.c.b16 %v487, %v483
    %v860 = vpack.c.b16 %v488, %v484
    %v861 = vpack.c.b16 %v489, %v485
    %v862 = vpack.c.b16 %v494, %v490
    %v863 = vpack.c.b16 %v495, %v491
    %v864 = vpack.c.b16 %v496, %v492
    %v865 = vpack.c.b16 %v497, %v493
    %v866 = vpack.c.b16 %v502, %v498
    %v867 = vpack.c.b16 %v503, %v499
    %v868 = vpack.c.b16 %v504, %v500
    %v869 = vpack.c.b16 %v505, %v501
    %v870 = vpack.c.b16 %v510, %v506
    %v871 = vpack.c.b16 %v511, %v507
    %v872 = vpack.c.b16 %v512, %v508
    %v873 = vpack.c.b16 %v513, %v509
    %v874 = vpack.c.b16 %v518, %v514
    %v875 = vpack.c.b16 %v519, %v515
    %v876 = vpack.c.b16 %v520, %v516
    %v877 = vpack.c.b16 %v521, %v517
    %v878 = vpack.c.b16 %v526, %v522
    %v879 = vpack.c.b16 %v527, %v523
    %v880 = vpack.c.b16 %v528, %v524
    %v881 = vpack.c.b16 %v529, %v525
    %v882 = vpack.c.b16 %v534, %v530
    %v883 = vpack.c.b16 %v535, %v531
    %v884 = vpack.c.b16 %v536, %v532
    %v885 = vpack.c.b16 %v537, %v533
    %v886 = vpack.c.b16 %v542, %v538
    %v887 = vpack.c.b16 %v543, %v539
    %v888 = vpack.c.b16 %v544, %v540
    %v889 = vpack.c.b16 %v545, %v541
    %v890 = vpack.c.b16 %v550, %v546
    %v891 = vpack.c.b16 %v551, %v547
    %v892 = vpack.c.b16 %v552, %v548
    %v893 = vpack.c.b16 %v553, %v549
    %v894 = vpack.c.b16 %v558, %v554
    %v895 = vpack.c.b16 %v559, %v555
    %v896 = vpack.c.b16 %v560, %v556
    %v897 = vpack.c.b16 %v561, %v557
    %v898 = vpack.c.b16 %v566, %v562
    %v899 = vpack.c.b16 %v567, %v563
    %v900 = vpack.c.b16 %v568, %v564
    %v901 = vpack.c.b16 %v569, %v565
    %v902 = vpack.c.b16 %v574, %v570
    %v903 = vpack.c.b16 %v575, %v571
    %v904 = vpack.c.b16 %v576, %v572
    %v905 = vpack.c.b16 %v577, %v573
    %v906 = vpack.c.b16 %v582, %v578
    %v907 = vpack.c.b16 %v583, %v579
    %v908 = vpack.c.b16 %v584, %v580
    %v909 = vpack.c.b16 %v585, %v581
    %v910 = vpack.c.b16 %v590, %v586
    %v911 = vpack.c.b16 %v591, %v587
    %v912 = vpack.c.b16 %v592, %v588
    %v913 = vpack.c.b16 %v593, %v589
    %v914 = vpack.c.b16 %v598, %v594
    %v915 = vpack.c.b16 %v599, %v595
    %v916 = vpack.c.b16 %v600, %v596
    %v917 = vpack.c.b16 %v601, %v597
    %v918 = vpack.c.b16 %v606, %v602
    %v919 = vpack.c.b16 %v607, %v603
    %v920 = vpack.c.b16 %v608, %v604
    %v921 = vpack.c.b16 %v609, %v605
    %v922 = vpack.c.b16 %v614, %v610
    %v923 = vpack.c.b16 %v615, %v611
    %v924 = vpack.c.b16 %v616, %v612
    %v925 = vpack.c.b16 %v617, %v613
    %v926 = vpack.c.b16 %v622, %v618
    %v927 = vpack.c.b16 %v623, %v619
    %v928 = vpack.c.b16 %v624, %v620
    %v929 = vpack.c.b16 %v625, %v621
    %v930 = vpack.c.b16 %v630, %v626
    %v931 = vpack.c.b16 %v631, %v627
    %v932 = vpack.c.b16 %v632, %v628
    %v933 = vpack.c.b16 %v633, %v629
    %v934 = vpack.c.b16 %v638, %v634
    %v935 = vpack.c.b16 %v639, %v635
    %v936 = vpack.c.b16 %v640, %v636
    %v937 = vpack.c.b16 %v641, %v637
    %v938 = vpack.c.b16 %v646, %v642
    %v939 = vpack.c.b16 %v647, %v643
    %v940 = vpack.c.b16 %v648, %v644
    %v941 = vpack.c.b16 %v649, %v645
    %v942 = vpack.c.b16 %v654, %v650
    %v943 = vpack.c.b16 %v655, %v651
    %v944 = vpack.c.b16 %v656, %v652
    %v945 = vpack.c.b16 %v657, %v653
    %v946 = vpack.c.b16 %v662, %v658
    %v947 = vpack.c.b16 %v663, %v659
    %v948 = vpack.c.b16 %v664, %v660
    %v949 = vpack.c.b16 %v665, %v661
    %v950 = vpack.c.b16 %v670, %v666
    %v951 = vpack.c.b16 %v671, %v667
    %v952 = vpack.c.b16 %v672, %v668
    %v953 = vpack.c.b16 %v673, %v669
    %v954 = vpack.c.b16 %v678, %v674
    %v955 = vpack.c.b16 %v679, %v675
    %v956 = vpack.c.b16 %v680, %v676
    %v957 = vpack.c.b16 %v681, %v677
    %v958 = vpack.c.b16 %v686, %v682
    %v959 = vpack.c.b16 %v687, %v683
    %v960 = vpack.c.b16 %v688, %v684
    %v961 = vpack.c.b16 %v689, %v685
    %v962 = vpack.c.b16 %v694, %v690
    %v963 = vpack.c.b16 %v695, %v691
    %v964 = vpack.c.b16 %v696, %v692
    %v965 = vpack.c.b16 %v697, %v693
    %v966 = vpack.c.b16 %v702, %v698
    %v967 = vpack.c.b16 %v703, %v699
    %v968 = vpack.c.b16 %v704, %v700
    %v969 = vpack.c.b16 %v705, %v701
    %v970 = vpack.c.b16 %v710, %v706
    %v971 = vpack.c.b16 %v711, %v707
    %v972 = vpack.c.b16 %v712, %v708
    %v973 = vpack.c.b16 %v713, %v709
    %v974 = vpack.c.b16 %v718, %v714
    %v975 = vpack.c.b16 %v719, %v715
    %v976 = vpack.c.b16 %v720, %v716
    %v977 = vpack.c.b16 %v721, %v717
    %v978 = vpack.c.b16 %v726, %v722
    %v979 = vpack.c.b16 %v727, %v723
    %v980 = vpack.c.b16 %v728, %v724
    %v981 = vpack.c.b16 %v729, %v725
    %v982 = vpack.c.b16 %v734, %v730
    %v983 = vpack.c.b16 %v735, %v731
    %v984 = vpack.c.b16 %v736, %v732
    %v985 = vpack.c.b16 %v737, %v733
    %v986 = vpack.c.b16 %v742, %v738
    %v987 = vpack.c.b16 %v743, %v739
    %v988 = vpack.c.b16 %v744, %v740
    %v989 = vpack.c.b16 %v745, %v741
    %v990 = vpack.c.b16 %v750, %v746
    %v991 = vpack.c.b16 %v751, %v747
    %v992 = vpack.c.b16 %v752, %v748
    %v993 = vpack.c.b16 %v753, %v749
    %v994 = vpack.c.b16 %v758, %v754
    %v995 = vpack.c.b16 %v759, %v755
    %v996 = vpack.c.b16 %v760, %v756
    %v997 = vpack.c.b16 %v761, %v757
    %v998 = vpack.c.b16 %v766, %v762
    %v999 = vpack.c.b16 %v767, %v763
    %v1000 = vpack.c.b16 %v768, %v764
    %v1001 = vpack.c.b16 %v769, %v765
    %v1002 = vpack.c.b16 %v774, %v770
    %v1003 = vpack.c.b16 %v775, %v771
    %v1004 = vpack.c.b16 %v776, %v772
    %v1005 = vpack.c.b16 %v777, %v773
    %v1006 = vpack.c.b16 %v782, %v778
    %v1007 = vpack.c.b16 %v783, %v779
    %v1008 = vpack.c.b16 %v784, %v780
    %v1009 = vpack.c.b16 %v785, %v781
    %v1010 = vpack.c.b16 %v790, %v786
    %v1011 = vpack.c.b16 %v791, %v787
    %v1012 = vpack.c.b16 %v792, %v788
    %v1013 = vpack.c.b16 %v793, %v789
    %v1014 = vpack.c.b16 %v798, %v794
    %v1015 = vpack.c.b16 %v799, %v795
    %v1016 = vpack.c.b16 %v800, %v796
    %v1017 = vpack.c.b16 %v801, %v797
    %v1018 = vpack.c.b16 %v806, %v802
    %v1019 = vpack.c.b16 %v807, %v803
    %v1020 = vpack.c.b16 %v808, %v804
    %v1021 = vpack.c.b16 %v809, %v805
    %v1022 = vpack.c.b16 %v814, %v810
    %v1023 = vpack.c.b16 %v815, %v811
    %v1024 = vpack.c.b16 %v816, %v812
    %v1025 = vpack.c.b16 %v817, %v813
    %v1026 = vpack.c.b16 %v822, %v818
    %v1027 = vpack.c.b16 %v823, %v819
    %v1028 = vpack.c.b16 %v824, %v820
    %v1029 = vpack.c.b16 %v825, %v821
    %v1030 = vpack.c.b16 %v830, %v826
    %v1031 = vpack.c.b16 %v831, %v827
    %v1032 = vpack.c.b16 %v832, %v828
    %v1033 = vpack.c.b16 %v833, %v829
    %v1034 = vpack.c.b16 %v838, %v834
    %v1035 = vpack.c.b16 %v839, %v835
    %v1036 = vpack.c.b16 %v840, %v836
    %v1037 = vpack.c.b16 %v841, %v837
    %v1038 = vpack.c.b16 %v846, %v842
    %v1039 = vpack.c.b16 %v847, %v843
    %v1040 = vpack.c.b16 %v848, %v844
    %v1041 = vpack.c.b16 %v849, %v845
    %1234 = vmatprep.subr.bf16.mxu0 %v851
    %1235 = vmatpush1.bf16.msra.mxu0 %v850
    %1236 = vmatprep.subr.bf16.mxu0 %v855
    %1237 = vmatpush1.bf16.msra.mxu0 %v854
    %1238 = vmatprep.subr.bf16.mxu0 %v859
    %1239 = vmatpush1.bf16.msra.mxu0 %v858
    %1240 = vmatprep.subr.bf16.mxu0 %v863
    %1241 = vmatpush1.bf16.msra.mxu0 %v862
    %1242 = vmatprep.subr.bf16.mxu0 %v867
    %1243 = vmatpush1.bf16.msra.mxu0 %v866
    %1244 = vmatprep.subr.bf16.mxu0 %v871
    %1245 = vmatpush1.bf16.msra.mxu0 %v870
    %1246 = vmatprep.subr.bf16.mxu0 %v875
    %1247 = vmatpush1.bf16.msra.mxu0 %v874
    %1248 = vmatprep.subr.bf16.mxu0 %v879
    %1249 = vmatpush1.bf16.msra.mxu0 %v878
    %1250 = vmatprep.subr.bf16.mxu0 %v883
    %1251 = vmatpush1.bf16.msra.mxu0 %v882
    %1252 = vmatprep.subr.bf16.mxu0 %v887
    %1253 = vmatpush1.bf16.msra.mxu0 %v886
    %1254 = vmatprep.subr.bf16.mxu0 %v891
    %1255 = vmatpush1.bf16.msra.mxu0 %v890
    %1256 = vmatprep.subr.bf16.mxu0 %v895
    %1257 = vmatpush1.bf16.msra.mxu0 %v894
    %1258 = vmatprep.subr.bf16.mxu0 %v899
    %1259 = vmatpush1.bf16.msra.mxu0 %v898
    %1260 = vmatprep.subr.bf16.mxu0 %v903
    %1261 = vmatpush1.bf16.msra.mxu0 %v902
    %1262 = vmatprep.subr.bf16.mxu0 %v907
    %1263 = vmatpush1.bf16.msra.mxu0 %v906
    %1264 = vmatprep.subr.bf16.mxu0 %v911
    %1265 = vmatpush1.bf16.msra.mxu0 %v910
    %1266 = vmatprep.mubr.bf16.mxu0 %v55
    %1267 = vmatmul.mubr.bf16.gmra.mrb[0].mxu0 %v54
    %v1268 = vpop.f32.mrb[0].mxu0
    %v1269 = vadd.f32 %v257, %v1268
    %v1270 = vpop.f32.mrb[0].mxu0
    %v1271 = vadd.f32 %v261, %v1270
    %v1272 = vpop.f32.mrb[0].mxu0
    %v1273 = vadd.f32 %v257, %v1272
    %v1274 = vpop.f32.mrb[0].mxu0
    %v1275 = vadd.f32 %v261, %v1274
    %1276 = vdwg.mxu0
    %1277 = vmatprep.subr.bf16.mxu0 %v915
    %1278 = vmatpush1.bf16.msra.mxu0 %v914
    %1279 = vmatprep.subr.bf16.mxu0 %v919
    %1280 = vmatpush1.bf16.msra.mxu0 %v918
    %1281 = vmatprep.subr.bf16.mxu0 %v923
    %1282 = vmatpush1.bf16.msra.mxu0 %v922
    %1283 = vmatprep.subr.bf16.mxu0 %v927
    %1284 = vmatpush1.bf16.msra.mxu0 %v926
    %1285 = vmatprep.subr.bf16.mxu0 %v931
    %1286 = vmatpush1.bf16.msra.mxu0 %v930
    %1287 = vmatprep.subr.bf16.mxu0 %v935
    %1288 = vmatpush1.bf16.msra.mxu0 %v934
    %1289 = vmatprep.subr.bf16.mxu0 %v939
    %1290 = vmatpush1.bf16.msra.mxu0 %v938
    %1291 = vmatprep.subr.bf16.mxu0 %v943
    %1292 = vmatpush1.bf16.msra.mxu0 %v942
    %1293 = vmatprep.subr.bf16.mxu0 %v947
    %1294 = vmatpush1.bf16.msra.mxu0 %v946
    %1295 = vmatprep.subr.bf16.mxu0 %v951
    %1296 = vmatpush1.bf16.msra.mxu0 %v950
    %1297 = vmatprep.subr.bf16.mxu0 %v955
    %1298 = vmatpush1.bf16.msra.mxu0 %v954
    %1299 = vmatprep.subr.bf16.mxu0 %v959
    %1300 = vmatpush1.bf16.msra.mxu0 %v958
    %1301 = vmatprep.subr.bf16.mxu0 %v963
    %1302 = vmatpush1.bf16.msra.mxu0 %v962
    %1303 = vmatprep.subr.bf16.mxu0 %v967
    %1304 = vmatpush1.bf16.msra.mxu0 %v966
    %1305 = vmatprep.subr.bf16.mxu0 %v971
    %1306 = vmatpush1.bf16.msra.mxu0 %v970
    %1307 = vmatprep.subr.bf16.mxu0 %v975
    %1308 = vmatpush1.bf16.msra.mxu0 %v974
    %1309 = vmatprep.mubr.bf16.mxu0 %v57
    %1310 = vmatmul.mubr.bf16.gmra.mrb[0].mxu0 %v56
    %v1311 = vpop.f32.mrb[0].mxu0
    %v1312 = vadd.f32 %v1269, %v1311
    %v1313 = vpop.f32.mrb[0].mxu0
    %v1314 = vadd.f32 %v1271, %v1313
    %v1315 = vpop.f32.mrb[0].mxu0
    %v1316 = vadd.f32 %v1273, %v1315
    %v1317 = vpop.f32.mrb[0].mxu0
    %v1318 = vadd.f32 %v1275, %v1317
    %1319 = vdwg.mxu0
    %1320 = vmatprep.subr.bf16.mxu0 %v979
    %1321 = vmatpush1.bf16.msra.mxu0 %v978
    %1322 = vmatprep.subr.bf16.mxu0 %v983
    %1323 = vmatpush1.bf16.msra.mxu0 %v982
    %1324 = vmatprep.subr.bf16.mxu0 %v987
    %1325 = vmatpush1.bf16.msra.mxu0 %v986
    %1326 = vmatprep.subr.bf16.mxu0 %v991
    %1327 = vmatpush1.bf16.msra.mxu0 %v990
    %1328 = vmatprep.subr.bf16.mxu0 %v995
    %1329 = vmatpush1.bf16.msra.mxu0 %v994
    %1330 = vmatprep.subr.bf16.mxu0 %v999
    %1331 = vmatpush1.bf16.msra.mxu0 %v998
    %1332 = vmatprep.subr.bf16.mxu0 %v1003
    %1333 = vmatpush1.bf16.msra.mxu0 %v1002
    %1334 = vmatprep.subr.bf16.mxu0 %v1007
    %1335 = vmatpush1.bf16.msra.mxu0 %v1006
    %1336 = vmatprep.subr.bf16.mxu0 %v1011
    %1337 = vmatpush1.bf16.msra.mxu0 %v1010
    %1338 = vmatprep.subr.bf16.mxu0 %v1015
    %1339 = vmatpush1.bf16.msra.mxu0 %v1014
    %1340 = vmatprep.subr.bf16.mxu0 %v1019
    %1341 = vmatpush1.bf16.msra.mxu0 %v1018
    %1342 = vmatprep.subr.bf16.mxu0 %v1023
    %1343 = vmatpush1.bf16.msra.mxu0 %v1022
    %1344 = vmatprep.subr.bf16.mxu0 %v1027
    %1345 = vmatpush1.bf16.msra.mxu0 %v1026
    %1346 = vmatprep.subr.bf16.mxu0 %v1031
    %1347 = vmatpush1.bf16.msra.mxu0 %v1030
    %1348 = vmatprep.subr.bf16.mxu0 %v1035
    %1349 = vmatpush1.bf16.msra.mxu0 %v1034
    %1350 = vmatprep.subr.bf16.mxu0 %v1039
    %1351 = vmatpush1.bf16.msra.mxu0 %v1038
    %1352 = vmatprep.mubr.bf16.mxu0 %v59
    %1353 = vmatmul.mubr.bf16.gmra.mrb[0].mxu0 %v58
    %v1354 = vpop.f32.mrb[0].mxu0
    %v1355 = vadd.f32 %v1312, %v1354
    %v1356 = vpop.f32.mrb[0].mxu0
    %v1357 = vadd.f32 %v1314, %v1356
    %v1358 = vpop.f32.mrb[0].mxu0
    %v1359 = vadd.f32 %v1316, %v1358
    %v1360 = vpop.f32.mrb[0].mxu0
    %v1361 = vadd.f32 %v1318, %v1360
    %1362 = vdwg.mxu0
    %1363 = vmatprep.subr.bf16.mxu0 %v853
    %1364 = vmatpush1.bf16.msra.mxu0 %v852
    %1365 = vmatprep.subr.bf16.mxu0 %v857
    %1366 = vmatpush1.bf16.msra.mxu0 %v856
    %1367 = vmatprep.subr.bf16.mxu0 %v861
    %1368 = vmatpush1.bf16.msra.mxu0 %v860
    %1369 = vmatprep.subr.bf16.mxu0 %v865
    %1370 = vmatpush1.bf16.msra.mxu0 %v864
    %1371 = vmatprep.subr.bf16.mxu0 %v869
    %1372 = vmatpush1.bf16.msra.mxu0 %v868
    %1373 = vmatprep.subr.bf16.mxu0 %v873
    %1374 = vmatpush1.bf16.msra.mxu0 %v872
    %1375 = vmatprep.subr.bf16.mxu0 %v877
    %1376 = vmatpush1.bf16.msra.mxu0 %v876
    %1377 = vmatprep.subr.bf16.mxu0 %v881
    %1378 = vmatpush1.bf16.msra.mxu0 %v880
    %1379 = vmatprep.subr.bf16.mxu0 %v885
    %1380 = vmatpush1.bf16.msra.mxu0 %v884
    %1381 = vmatprep.subr.bf16.mxu0 %v889
    %1382 = vmatpush1.bf16.msra.mxu0 %v888
    %1383 = vmatprep.subr.bf16.mxu0 %v893
    %1384 = vmatpush1.bf16.msra.mxu0 %v892
    %1385 = vmatprep.subr.bf16.mxu0 %v897
    %1386 = vmatpush1.bf16.msra.mxu0 %v896
    %1387 = vmatprep.subr.bf16.mxu0 %v901
    %1388 = vmatpush1.bf16.msra.mxu0 %v900
    %1389 = vmatprep.subr.bf16.mxu0 %v905
    %1390 = vmatpush1.bf16.msra.mxu0 %v904
    %1391 = vmatprep.subr.bf16.mxu0 %v909
    %1392 = vmatpush1.bf16.msra.mxu0 %v908
    %1393 = vmatprep.subr.bf16.mxu0 %v913
    %1394 = vmatpush1.bf16.msra.mxu0 %v912
    %1395 = vmatprep.mubr.bf16.mxu0 %v55
    %1396 = vmatmul.mubr.bf16.gmra.mrb[0].mxu0 %v54
    %v1397 = vpop.f32.mrb[0].mxu0
    %v1398 = vadd.f32 %v265, %v1397
    %v1399 = vpop.f32.mrb[0].mxu0
    %v1400 = vadd.f32 %v269, %v1399
    %v1401 = vpop.f32.mrb[0].mxu0
    %v1402 = vadd.f32 %v265, %v1401
    %v1403 = vpop.f32.mrb[0].mxu0
    %v1404 = vadd.f32 %v269, %v1403
    %1405 = vdwg.mxu0
    %1406 = vmatprep.subr.bf16.mxu0 %v917
    %1407 = vmatpush1.bf16.msra.mxu0 %v916
    %1408 = vmatprep.subr.bf16.mxu0 %v921
    %1409 = vmatpush1.bf16.msra.mxu0 %v920
    %1410 = vmatprep.subr.bf16.mxu0 %v925
    %1411 = vmatpush1.bf16.msra.mxu0 %v924
    %1412 = vmatprep.subr.bf16.mxu0 %v929
    %1413 = vmatpush1.bf16.msra.mxu0 %v928
    %1414 = vmatprep.subr.bf16.mxu0 %v933
    %1415 = vmatpush1.bf16.msra.mxu0 %v932
    %1416 = vmatprep.subr.bf16.mxu0 %v937
    %1417 = vmatpush1.bf16.msra.mxu0 %v936
    %1418 = vmatprep.subr.bf16.mxu0 %v941
    %1419 = vmatpush1.bf16.msra.mxu0 %v940
    %1420 = vmatprep.subr.bf16.mxu0 %v945
    %1421 = vmatpush1.bf16.msra.mxu0 %v944
    %1422 = vmatprep.subr.bf16.mxu0 %v949
    %1423 = vmatpush1.bf16.msra.mxu0 %v948
    %1424 = vmatprep.subr.bf16.mxu0 %v953
    %1425 = vmatpush1.bf16.msra.mxu0 %v952
    %1426 = vmatprep.subr.bf16.mxu0 %v957
    %1427 = vmatpush1.bf16.msra.mxu0 %v956
    %1428 = vmatprep.subr.bf16.mxu0 %v961
    %1429 = vmatpush1.bf16.msra.mxu0 %v960
    %1430 = vmatprep.subr.bf16.mxu0 %v965
    %1431 = vmatpush1.bf16.msra.mxu0 %v964
    %1432 = vmatprep.subr.bf16.mxu0 %v969
    %1433 = vmatpush1.bf16.msra.mxu0 %v968
    %1434 = vmatprep.subr.bf16.mxu0 %v973
    %1435 = vmatpush1.bf16.msra.mxu0 %v972
    %1436 = vmatprep.subr.bf16.mxu0 %v977
    %1437 = vmatpush1.bf16.msra.mxu0 %v976
    %1438 = vmatprep.mubr.bf16.mxu0 %v57
    %1439 = vmatmul.mubr.bf16.gmra.mrb[0].mxu0 %v56
    %v1440 = vpop.f32.mrb[0].mxu0
    %v1441 = vadd.f32 %v1398, %v1440
    %v1442 = vpop.f32.mrb[0].mxu0
    %v1443 = vadd.f32 %v1400, %v1442
    %v1444 = vpop.f32.mrb[0].mxu0
    %v1445 = vadd.f32 %v1402, %v1444
    %v1446 = vpop.f32.mrb[0].mxu0
    %v1447 = vadd.f32 %v1404, %v1446
    %1448 = vdwg.mxu0
    %1449 = vmatprep.subr.bf16.mxu0 %v981
    %1450 = vmatpush1.bf16.msra.mxu0 %v980
    %1451 = vmatprep.subr.bf16.mxu0 %v985
    %1452 = vmatpush1.bf16.msra.mxu0 %v984
    %1453 = vmatprep.subr.bf16.mxu0 %v989
    %1454 = vmatpush1.bf16.msra.mxu0 %v988
    %1455 = vmatprep.subr.bf16.mxu0 %v993
    %1456 = vmatpush1.bf16.msra.mxu0 %v992
    %1457 = vmatprep.subr.bf16.mxu0 %v997
    %1458 = vmatpush1.bf16.msra.mxu0 %v996
    %1459 = vmatprep.subr.bf16.mxu0 %v1001
    %1460 = vmatpush1.bf16.msra.mxu0 %v1000
    %1461 = vmatprep.subr.bf16.mxu0 %v1005
    %1462 = vmatpush1.bf16.msra.mxu0 %v1004
    %1463 = vmatprep.subr.bf16.mxu0 %v1009
    %1464 = vmatpush1.bf16.msra.mxu0 %v1008
    %1465 = vmatprep.subr.bf16.mxu0 %v1013
    %1466 = vmatpush1.bf16.msra.mxu0 %v1012
    %1467 = vmatprep.subr.bf16.mxu0 %v1017
    %1468 = vmatpush1.bf16.msra.mxu0 %v1016
    %1469 = vmatprep.subr.bf16.mxu0 %v1021
    %1470 = vmatpush1.bf16.msra.mxu0 %v1020
    %1471 = vmatprep.subr.bf16.mxu0 %v1025
    %1472 = vmatpush1.bf16.msra.mxu0 %v1024
    %1473 = vmatprep.subr.bf16.mxu0 %v1029
    %1474 = vmatpush1.bf16.msra.mxu0 %v1028
    %1475 = vmatprep.subr.bf16.mxu0 %v1033
    %1476 = vmatpush1.bf16.msra.mxu0 %v1032
    %1477 = vmatprep.subr.bf16.mxu0 %v1037
    %1478 = vmatpush1.bf16.msra.mxu0 %v1036
    %1479 = vmatprep.subr.bf16.mxu0 %v1041
    %1480 = vmatpush1.bf16.msra.mxu0 %v1040
    %1481 = vmatprep.mubr.bf16.mxu0 %v59
    %1482 = vmatmul.mubr.bf16.gmra.mrb[0].mxu0 %v58
    %v1483 = vpop.f32.mrb[0].mxu0
    %v1484 = vadd.f32 %v1441, %v1483
    %v1485 = vpop.f32.mrb[0].mxu0
    %v1486 = vadd.f32 %v1443, %v1485
    %v1487 = vpop.f32.mrb[0].mxu0
    %v1488 = vadd.f32 %v1445, %v1487
    %v1489 = vpop.f32.mrb[0].mxu0
    %v1490 = vadd.f32 %v1447, %v1489
    %1491 = vdwg.mxu0
    %v1492 = vpack.c.bf16 %v1359, %v1355
    %v1493 = vpack.c.bf16 %v1361, %v1357
    %v1494 = vpack.c.bf16 %v1488, %v1484
    %v1495 = vpack.c.bf16 %v1490, %v1486
    %v1500 = vunpack.c.l.b16 %v1492
    %v1501 = vunpack.c.l.b16 %v1493
    %v1502 = vunpack.c.l.b16 %v1494
    %v1503 = vunpack.c.l.b16 %v1495
    %v1504 = vunpack.c.h.b16 %v1492
    %v1505 = vunpack.c.h.b16 %v1493
    %v1506 = vunpack.c.h.b16 %v1494
    %v1507 = vunpack.c.h.b16 %v1495
    %v1508 = vpack.c.b16 %v1501, %v1500
    %v1509 = vpack.c.b16 %v1503, %v1502
    %v1510 = vpack.c.b16 %v1505, %v1504
    %v1511 = vpack.c.b16 %v1507, %v1506
    %1516 = vst [vmem:[%s3] sm:$0xff] %v1508
    %1517 = vst [vmem:[%s3 + $0x8] sm:$0xff] %v1509
    %1518 = vst [vmem:[%s3 + $0x10] sm:$0xff] %v1510
    %1519 = vst [vmem:[%s3 + $0x18] sm:$0xff] %v1511
    // Predicated region
    $region22: #{lstm_classifier_forward.2} parent=1 // pred_check
      _
    $region23: #{lstm_classifier_forward.2} parent=1 // pred_check_branch
      %1521 = sbr.rel (0) target = $region25
    $region24: #{lstm_classifier_forward.2} parent=1 // pred_region
      _
    $region25: #{lstm_classifier_forward.2} parent=1 // pred_fallthru
      _
    // Predicated region
    $region26: #{lstm_classifier_forward.2} parent=1 // pred_check
      _
    $region27: #{lstm_classifier_forward.2} parent=1 // pred_check_branch
      %1523 = sbr.rel (0) target = $region29
    $region28: #{lstm_classifier_forward.2} parent=1 // pred_region
      _
    $region29: #{lstm_classifier_forward.2} parent=1 // pred_fallthru
      _
    %1524 = vsyncpa [#allocation3], 1
    %1525 = vsyncpa [#allocation5], 1

</llo_original>
